<compile_context>
chip_gen: v5e
topology: v5e:2x2
jax: 0.10.0
libtpu: 0.0.40
codegen_flags: <defaults>
</compile_context>

<pallas_src>
import jax
import jax.numpy as jnp
from jax.experimental import pallas as pl
from jax.experimental.pallas import tpu as pltpu


def stn3d_pool_kernel(x_ref,
                      w1_ref, b1_ref, w2_ref, b2_ref, w3_ref, b3_ref,
                      g_ref, gmax_ref):
    """One (batch b, points-tile n) grid step of the streaming conv + max-pool.

    x_ref    : (TILE_N, 3)     f32   points tile (batch dim squeezed)
    w1/b1    : (3, 64)/(1, 64) f32   conv1
    w2/b2    : (64, 128) bf16 / (1, 128) f32   conv2
    w3/b3    : (128, 1024) bf16 / (1, 1024) f32  conv3
    g_ref    : (1, 1024)       f32   pooled features for this batch row (output)
    gmax_ref : (8, 1024)       f32   running max accumulator (VMEM scratch)
    """
    n = pl.program_id(1)

    x = x_ref[...]                                            # (TILE_N, 3) f32

    # conv1 (3 -> 64): single K=3 MXU pass, f32.
    h = jnp.dot(x, w1_ref[...], preferred_element_type=jnp.float32) + b1_ref[...]
    h = jnp.maximum(h, 0.0).astype(jnp.bfloat16)              # (TILE_N, 64)

    # conv2 (64 -> 128): bf16 operands, f32 accumulation.
    h = jnp.dot(h, w2_ref[...], preferred_element_type=jnp.float32) + b2_ref[...]
    h = jnp.maximum(h, 0.0).astype(jnp.bfloat16)              # (TILE_N, 128)

    # conv3 (128 -> 1024): bf16 operands, f32 accumulation.  Dominant matmul.
    h = jnp.dot(h, w3_ref[...], preferred_element_type=jnp.float32) + b3_ref[...]
    h = jnp.maximum(h, 0.0)                                   # (TILE_N, 1024) f32

    # Per-tile partial max as a pure-VPU reduction into (8, 1024).
    # (TILE_N, 1024) -> (TILE_N//8, 8, 1024) is layout-preserving (no relayout).
    tile_n = h.shape[0]
    part = jnp.max(h.reshape(tile_n // 8, 8, 1024), axis=0)   # (8, 1024)

    @pl.when(n == 0)
    def _():
        gmax_ref[...] = jnp.full_like(gmax_ref, -jnp.inf)

    gmax_ref[...] = jnp.maximum(gmax_ref[...], part)

    # Final 8 -> 1 cross-sublane reduce, once per batch row.
    @pl.when(n == pl.num_programs(1) - 1)
    def _():
        g_ref[...] = jnp.max(gmax_ref[...], axis=0, keepdims=True)   # (1, 1024)


def stn3d_head_kernel(g_ref, w4_ref, b4_ref, w5_ref, b5_ref, w6_ref, b6_ref,
                      out_ref):
    """fc1 -> fc2 -> fc3 (+ identity folded into b6) as one batched M=B stage.

    g_ref   : (B, 1024) f32 pooled features
    w6/b6   : padded to 16 output lanes; the flattened 3x3 identity is folded
              into b6, so out cols 9..15 are zero.
    out_ref : (B, 16) f32
    """
    f = jnp.dot(g_ref[...], w4_ref[...], preferred_element_type=jnp.float32) + b4_ref[...]
    f = jnp.maximum(f, 0.0)                                   # (B, 512)
    f = jnp.dot(f, w5_ref[...], preferred_element_type=jnp.float32) + b5_ref[...]
    f = jnp.maximum(f, 0.0)                                   # (B, 256)
    out_ref[...] = (jnp.dot(f, w6_ref[...], preferred_element_type=jnp.float32)
                    + b6_ref[...])                            # (B, 16)


def stn3d_forward(x_ncw, params, *, tile_n=1024,
                  vmem_limit_bytes=48 * 1024 * 1024):
    """x_ncw: (B, 3, N) float32 (PyTorch NCW layout). Returns (B, 3, 3)."""
    B, C, N = x_ncw.shape
    assert C == 3

    # Channels-last so 1x1 convs become matmuls over the lane axis.
    x = jnp.transpose(x_ncw, (0, 2, 1))                       # (B, N, 3)

    # Clamp the tile for tiny N (keeps the demo small); keep it sublane-aligned.
    tile_n = max(8, min(tile_n, ((N + 7) // 8) * 8))
    assert tile_n % 8 == 0

    # Pad the points axis to a multiple of tile_n by duplicating the first
    # point -- duplicates never change the global max-pool result.
    num_tiles = pl.cdiv(N, tile_n)
    n_pad = num_tiles * tile_n
    if n_pad != N:
        pad = jnp.broadcast_to(x[:, :1, :], (B, n_pad - N, 3))
        x = jnp.concatenate([x, pad], axis=1)

    # --- Stage 1: streaming conv stack + global max-pool -> (B, 1, 1024) ----
    # conv2/conv3 weights shipped as bf16 (halves their DMA and VMEM residency).
    conv_args = (params['w1'], params['b1'],
                 params['w2'].astype(jnp.bfloat16), params['b2'],
                 params['w3'].astype(jnp.bfloat16), params['b3'])

    def resident(a):  # full-array block, constant index_map => fetched once
        return pl.BlockSpec(a.shape, lambda b, n: (0, 0))

    pooled = pl.pallas_call(
        stn3d_pool_kernel,
        out_shape=jax.ShapeDtypeStruct((B, 1, 1024), jnp.float32),
        grid_spec=pltpu.PrefetchScalarGridSpec(
            num_scalar_prefetch=0,
            grid=(B, num_tiles),
            in_specs=[pl.BlockSpec((None, tile_n, 3), lambda b, n: (b, n, 0))]
                     + [resident(a) for a in conv_args],
            out_specs=pl.BlockSpec((None, 1, 1024), lambda b, n: (b, 0, 0)),
            scratch_shapes=[pltpu.VMEM((8, 1024), jnp.float32)],
        ),
        compiler_params=pltpu.CompilerParams(
            dimension_semantics=("parallel", "arbitrary"),
            vmem_limit_bytes=vmem_limit_bytes,
        ),
    )(x, *conv_args)

    g = pooled.reshape(B, 1024)

    # --- Stage 2: batched FC head (single grid step) -> (B, 16) -------------
    # Pad fc3 to 16 output lanes and fold the flattened 3x3 identity into bias.
    w6, b6 = params['w6'], params['b6']
    pad_w = 16 - w6.shape[1]
    eye9 = jnp.eye(3, dtype=jnp.float32).reshape(1, 9)
    w6p = jnp.pad(w6, ((0, 0), (0, pad_w)))
    b6p = jnp.pad(b6 + eye9, ((0, 0), (0, pad_w)))

    head_args = (params['w4'], params['b4'],
                 params['w5'], params['b5'],
                 w6p, b6p)

    out16 = pl.pallas_call(
        stn3d_head_kernel,
        out_shape=jax.ShapeDtypeStruct((B, 16), jnp.float32),
        grid_spec=pltpu.PrefetchScalarGridSpec(
            num_scalar_prefetch=0,
            grid=(1,),
            in_specs=[pl.BlockSpec((B, 1024), lambda i: (0, 0))]
                     + [pl.BlockSpec(a.shape, lambda i: (0, 0)) for a in head_args],
            out_specs=pl.BlockSpec((B, 16), lambda i: (0, 0)),
        ),
        compiler_params=pltpu.CompilerParams(
            dimension_semantics=("arbitrary",),
        ),
    )(g, *head_args)

    return out16[:, :9].reshape(B, 3, 3)


def init_params(key):
    """Deterministic synthetic parameters matching STN3d's layer shapes.

    PyTorch Conv1d(in, out, 1) weight is (out, in, 1) and Linear(in, out)
    weight is (out, in); we store the transposed (in, out) matmul form.
    """
    ks = jax.random.split(key, 12)

    def w(k, cin, cout):
        return jax.random.normal(k, (cin, cout), jnp.float32) / jnp.sqrt(cin)

    def b(k, cout):
        return 0.01 * jax.random.normal(k, (1, cout), jnp.float32)

    return {
        'w1': w(ks[0], 3, 64),     'b1': b(ks[1], 64),
        'w2': w(ks[2], 64, 128),   'b2': b(ks[3], 128),
        'w3': w(ks[4], 128, 1024), 'b3': b(ks[5], 1024),
        'w4': w(ks[6], 1024, 512), 'b4': b(ks[7], 512),
        'w5': w(ks[8], 512, 256),  'b5': b(ks[9], 256),
        'w6': w(ks[10], 256, 9),   'b6': b(ks[11], 9),
    }


def stn3d_reference(x_ncw, p):
    """Pure-JAX f32 reference mirroring the PyTorch forward."""
    B = x_ncw.shape[0]
    x = jnp.transpose(x_ncw, (0, 2, 1))                       # (B, N, 3)
    h = jax.nn.relu(jnp.einsum('bnc,cd->bnd', x, p['w1']) + p['b1'])
    h = jax.nn.relu(jnp.einsum('bnc,cd->bnd', h, p['w2']) + p['b2'])
    h = jax.nn.relu(jnp.einsum('bnc,cd->bnd', h, p['w3']) + p['b3'])
    g = jnp.max(h, axis=1)
    f = jax.nn.relu(g @ p['w4'] + p['b4'])
    f = jax.nn.relu(f @ p['w5'] + p['b5'])
    o = f @ p['w6'] + p['b6']
    o = o + jnp.eye(3, dtype=jnp.float32).reshape(1, 9)
    return o.reshape(B, 3, 3)


if __name__ == "__main__":
    key = jax.random.PRNGKey(0)
    k_x, k_p = jax.random.split(key)

    B, N = 2, 500                                             # small, ragged N
    x = jax.random.normal(k_x, (B, 3, N), jnp.float32)        # PyTorch NCW layout
    params = init_params(k_p)
    ref = stn3d_reference(x, params)

    # Multi-tile path (tile_n=128 -> 4 point tiles/row with a duplicated-point
    # ragged pad): exercises the running-max init / accumulate / finalize.
    out_multi = jax.block_until_ready(stn3d_forward(x, params, tile_n=128))
    # Default (large-tile) path: single tile per batch row.
    out_big = jax.block_until_ready(stn3d_forward(x, params))

    assert out_multi.shape == (B, 3, 3)
    assert out_big.shape == (B, 3, 3)
    # bf16 conv2/conv3 operands (f32 accumulation) => loosened tolerance vs the
    # pure-f32 reference, per the performance review.
    assert jnp.allclose(out_multi, ref, atol=1e-1, rtol=1e-1), "mismatch (multi-tile)"
    assert jnp.allclose(out_big, ref, atol=1e-1, rtol=1e-1), "mismatch (single-tile)"
    assert jnp.allclose(out_multi, out_big, atol=1e-5, rtol=1e-5), "tile-size dependence"

    print("KERNEL_OK")
</pallas_src>

<mosaic_0001>
module attributes {stable_mosaic.version = 11 : i64} {
  func.func @stn3d_pool_kernel(%arg0: i32, %arg1: i32, %arg2: memref<1x128x3xf32, #tpu.memory_space<vmem>>, %arg3: memref<3x64xf32, #tpu.memory_space<vmem>>, %arg4: memref<1x64xf32, #tpu.memory_space<vmem>>, %arg5: memref<64x128xbf16, #tpu.memory_space<vmem>>, %arg6: memref<1x128xf32, #tpu.memory_space<vmem>>, %arg7: memref<128x1024xbf16, #tpu.memory_space<vmem>>, %arg8: memref<1x1024xf32, #tpu.memory_space<vmem>>, %arg9: memref<1x1x1024xf32, #tpu.memory_space<vmem>>, %arg10: memref<8x1024xf32, #tpu.memory_space<vmem>>) attributes {dimension_semantics = [#tpu.dimension_semantics<parallel>, #tpu.dimension_semantics<arbitrary>], iteration_bounds = array<i64: 2, 4>, scalar_prefetch = 0 : i64, scratch_operands = 1 : i64, tpu.core_type = #tpu.core_type<tc>, window_params = [{transform_indices = @transform_0, window_bounds = array<i64: 1, 128, 3>}, {pipeline_mode = #tpu.pipeline_mode<synchronous>, transform_indices = @transform_1, window_bounds = array<i64: 3, 64>}, {pipeline_mode = #tpu.pipeline_mode<synchronous>, transform_indices = @transform_2, window_bounds = array<i64: 1, 64>}, {pipeline_mode = #tpu.pipeline_mode<synchronous>, transform_indices = @transform_3, window_bounds = array<i64: 64, 128>}, {pipeline_mode = #tpu.pipeline_mode<synchronous>, transform_indices = @transform_4, window_bounds = array<i64: 1, 128>}, {pipeline_mode = #tpu.pipeline_mode<synchronous>, transform_indices = @transform_5, window_bounds = array<i64: 128, 1024>}, {pipeline_mode = #tpu.pipeline_mode<synchronous>, transform_indices = @transform_6, window_bounds = array<i64: 1, 1024>}, {transform_indices = @transform_7, window_bounds = array<i64: 1, 1, 1024>}]} {
    %c0 = arith.constant 0 : index
    %c0_0 = arith.constant 0 : index
    %c0_1 = arith.constant 0 : index
    %0 = vector.load %arg2[%c0, %c0_0, %c0_1] : memref<1x128x3xf32, #tpu.memory_space<vmem>>, vector<1x128x3xf32>
    %1 = vector.shape_cast %0 : vector<1x128x3xf32> to vector<128x3xf32>
    %c0_2 = arith.constant 0 : index
    %c0_3 = arith.constant 0 : index
    %2 = vector.load %arg3[%c0_2, %c0_3] : memref<3x64xf32, #tpu.memory_space<vmem>>, vector<3x64xf32>
    %cst = arith.constant dense<0.000000e+00> : vector<128x64xf32>
    %3 = tpu.matmul %1, %2, %cst {dimension_numbers = #tpu.dot_dimension_numbers<[1], [0], [0], [1], [0, 0, 1, 1], [], []>} : vector<128x3xf32>, vector<3x64xf32>, vector<128x64xf32> -> vector<128x64xf32>
    %c0_4 = arith.constant 0 : index
    %c0_5 = arith.constant 0 : index
    %4 = vector.load %arg4[%c0_4, %c0_5] : memref<1x64xf32, #tpu.memory_space<vmem>>, vector<1x64xf32>
    %5 = vector.broadcast %4 : vector<1x64xf32> to vector<128x64xf32>
    %6 = arith.addf %3, %5 : vector<128x64xf32>
    %cst_6 = arith.constant 0.000000e+00 : f32
    %7 = vector.broadcast %cst_6 : f32 to vector<128x64xf32>
    %8 = arith.maximumf %6, %7 : vector<128x64xf32>
    %9 = arith.truncf %8 : vector<128x64xf32> to vector<128x64xbf16>
    %c0_7 = arith.constant 0 : index
    %c0_8 = arith.constant 0 : index
    %10 = vector.load %arg5[%c0_7, %c0_8] : memref<64x128xbf16, #tpu.memory_space<vmem>>, vector<64x128xbf16>
    %cst_9 = arith.constant dense<0.000000e+00> : vector<128x128xf32>
    %11 = tpu.matmul %9, %10, %cst_9 {dimension_numbers = #tpu.dot_dimension_numbers<[1], [0], [0], [1], [0, 0, 1, 1], [], []>} : vector<128x64xbf16>, vector<64x128xbf16>, vector<128x128xf32> -> vector<128x128xf32>
    %c0_10 = arith.constant 0 : index
    %c0_11 = arith.constant 0 : index
    %12 = vector.load %arg6[%c0_10, %c0_11] : memref<1x128xf32, #tpu.memory_space<vmem>>, vector<1x128xf32>
    %13 = vector.broadcast %12 : vector<1x128xf32> to vector<128x128xf32>
    %14 = arith.addf %11, %13 : vector<128x128xf32>
    %cst_12 = arith.constant 0.000000e+00 : f32
    %15 = vector.broadcast %cst_12 : f32 to vector<128x128xf32>
    %16 = arith.maximumf %14, %15 : vector<128x128xf32>
    %17 = arith.truncf %16 : vector<128x128xf32> to vector<128x128xbf16>
    %c0_13 = arith.constant 0 : index
    %c0_14 = arith.constant 0 : index
    %18 = vector.load %arg7[%c0_13, %c0_14] : memref<128x1024xbf16, #tpu.memory_space<vmem>>, vector<128x1024xbf16>
    %cst_15 = arith.constant dense<0.000000e+00> : vector<128x1024xf32>
    %19 = tpu.matmul %17, %18, %cst_15 {dimension_numbers = #tpu.dot_dimension_numbers<[1], [0], [0], [1], [0, 0, 1, 1], [], []>} : vector<128x128xbf16>, vector<128x1024xbf16>, vector<128x1024xf32> -> vector<128x1024xf32>
    %c0_16 = arith.constant 0 : index
    %c0_17 = arith.constant 0 : index
    %20 = vector.load %arg8[%c0_16, %c0_17] : memref<1x1024xf32, #tpu.memory_space<vmem>>, vector<1x1024xf32>
    %21 = vector.broadcast %20 : vector<1x1024xf32> to vector<128x1024xf32>
    %22 = arith.addf %19, %21 : vector<128x1024xf32>
    %cst_18 = arith.constant 0.000000e+00 : f32
    %23 = vector.broadcast %cst_18 : f32 to vector<128x1024xf32>
    %24 = arith.maximumf %22, %23 : vector<128x1024xf32>
    %25 = vector.shape_cast %24 : vector<128x1024xf32> to vector<16x8x1024xf32>
    %cst_19 = arith.constant dense<0xFF800000> : vector<8x1024xf32>
    %26 = vector.multi_reduction <maximumf>, %25, %cst_19 [0] : vector<16x8x1024xf32> to vector<8x1024xf32>
    %c0_i32 = arith.constant 0 : i32
    %27 = arith.cmpi eq, %arg1, %c0_i32 : i32
    %28 = arith.extui %27 : i1 to i32
    %c0_i32_20 = arith.constant 0 : i32
    %29 = arith.cmpi ne, %28, %c0_i32_20 : i32
    scf.if %29 {
      %cst_26 = arith.constant 0xFF800000 : f32
      %36 = vector.broadcast %cst_26 : f32 to vector<8x1024xf32>
      %c0_27 = arith.constant 0 : index
      %c0_28 = arith.constant 0 : index
      %37 = vector.load %arg10[%c0_27, %c0_28] : memref<8x1024xf32, #tpu.memory_space<vmem>>, vector<8x1024xf32>
      tpu.vector_store %arg10[%c0_27, %c0_28], %36 {strides = array<i32>} : memref<8x1024xf32, #tpu.memory_space<vmem>>, vector<8x1024xf32>,
    } else {
    }
    %c0_21 = arith.constant 0 : index
    %c0_22 = arith.constant 0 : index
    %30 = vector.load %arg10[%c0_21, %c0_22] : memref<8x1024xf32, #tpu.memory_space<vmem>>, vector<8x1024xf32>
    %31 = arith.maximumf %30, %26 : vector<8x1024xf32>
    %c0_23 = arith.constant 0 : index
    %c0_24 = arith.constant 0 : index
    %32 = vector.load %arg10[%c0_23, %c0_24] : memref<8x1024xf32, #tpu.memory_space<vmem>>, vector<8x1024xf32>
    tpu.vector_store %arg10[%c0_23, %c0_24], %31 {strides = array<i32>} : memref<8x1024xf32, #tpu.memory_space<vmem>>, vector<8x1024xf32>,
    %c3_i32 = arith.constant 3 : i32
    %33 = arith.cmpi eq, %arg1, %c3_i32 : i32
    %34 = arith.extui %33 : i1 to i32
    %c0_i32_25 = arith.constant 0 : i32
    %35 = arith.cmpi ne, %34, %c0_i32_25 : i32
    scf.if %35 {
      %c0_26 = arith.constant 0 : index
      %c0_27 = arith.constant 0 : index
      %36 = vector.load %arg10[%c0_26, %c0_27] : memref<8x1024xf32, #tpu.memory_space<vmem>>, vector<8x1024xf32>
      %cst_28 = arith.constant dense<0xFF800000> : vector<1024xf32>
      %37 = vector.multi_reduction <maximumf>, %36, %cst_28 [0] : vector<8x1024xf32> to vector<1024xf32>
      %38 = vector.shape_cast %37 : vector<1024xf32> to vector<1x1024xf32>
      %c0_29 = arith.constant 0 : index
      %c0_30 = arith.constant 0 : index
      %c0_31 = arith.constant 0 : index
      %39 = vector.load %arg9[%c0_29, %c0_30, %c0_31] : memref<1x1x1024xf32, #tpu.memory_space<vmem>>, vector<1x1x1024xf32>
      %40 = vector.shape_cast %39 : vector<1x1x1024xf32> to vector<1x1024xf32>
      %41 = vector.shape_cast %38 : vector<1x1024xf32> to vector<1x1x1024xf32>
      tpu.vector_store %arg9[%c0_29, %c0_30, %c0_31], %41 {strides = array<i32>} : memref<1x1x1024xf32, #tpu.memory_space<vmem>>, vector<1x1x1024xf32>,
    } else {
    }
    return
  }
  func.func @transform_0(%arg0: i32, %arg1: i32) -> (i32, i32, i32) {
    %c0_i32 = arith.constant 0 : i32
    %c0_i32_0 = arith.constant 0 : i32
    return %arg0, %arg1, %c0_i32 : i32, i32, i32
  }
  func.func @transform_1(%arg0: i32, %arg1: i32) -> (i32, i32) {
    %c0_i32 = arith.constant 0 : i32
    %c0_i32_0 = arith.constant 0 : i32
    %c0_i32_1 = arith.constant 0 : i32
    return %c0_i32, %c0_i32_0 : i32, i32
  }
  func.func @transform_2(%arg0: i32, %arg1: i32) -> (i32, i32) {
    %c0_i32 = arith.constant 0 : i32
    %c0_i32_0 = arith.constant 0 : i32
    %c0_i32_1 = arith.constant 0 : i32
    return %c0_i32, %c0_i32_0 : i32, i32
  }
  func.func @transform_3(%arg0: i32, %arg1: i32) -> (i32, i32) {
    %c0_i32 = arith.constant 0 : i32
    %c0_i32_0 = arith.constant 0 : i32
    %c0_i32_1 = arith.constant 0 : i32
    return %c0_i32, %c0_i32_0 : i32, i32
  }
  func.func @transform_4(%arg0: i32, %arg1: i32) -> (i32, i32) {
    %c0_i32 = arith.constant 0 : i32
    %c0_i32_0 = arith.constant 0 : i32
    %c0_i32_1 = arith.constant 0 : i32
    return %c0_i32, %c0_i32_0 : i32, i32
  }
  func.func @transform_5(%arg0: i32, %arg1: i32) -> (i32, i32) {
    %c0_i32 = arith.constant 0 : i32
    %c0_i32_0 = arith.constant 0 : i32
    %c0_i32_1 = arith.constant 0 : i32
    return %c0_i32, %c0_i32_0 : i32, i32
  }
  func.func @transform_6(%arg0: i32, %arg1: i32) -> (i32, i32) {
    %c0_i32 = arith.constant 0 : i32
    %c0_i32_0 = arith.constant 0 : i32
    %c0_i32_1 = arith.constant 0 : i32
    return %c0_i32, %c0_i32_0 : i32, i32
  }
  func.func @transform_7(%arg0: i32, %arg1: i32) -> (i32, i32, i32) {
    %c0_i32 = arith.constant 0 : i32
    %c0_i32_0 = arith.constant 0 : i32
    %c0_i32_1 = arith.constant 0 : i32
    return %arg0, %c0_i32, %c0_i32_0 : i32, i32, i32
  }
}

</mosaic_0001>

<llo_original>
// kernel: tpu_custom_call.1
$region0: #{tpu_custom_call.1}
  #allocation0 [shape = 'u32[]', space=smem, size = 0x4, offset = 0x4, fixed_abs, tag = 'smem constant byte address 0x4 - core index']
  #allocation1 [shape = 'u32[72,128]{1,0:T(1,128)}', space=vmem, size = 0x9000, scoped, tag = 'internal scratch']
  #allocation2 [shape = 'f32[8,1024]{1,0:T(8,128)}', space=vmem, size = 0x8000, scoped, tag = 'scratch operand']
  %s0 = inlined_call_operand.vmem [shape: f32[2,512,3], index: 0, kind: input, shape index: {}]
  %s1 = inlined_call_operand.vmem [shape: f32[3,64], index: 1, kind: input, shape index: {}]
  %s2 = inlined_call_operand.vmem [shape: f32[1,64], index: 2, kind: input, shape index: {}]
  %s3 = inlined_call_operand.vmem [shape: bf16[64,128], index: 3, kind: input, shape index: {}]
  %s4 = inlined_call_operand.vmem [shape: f32[1,128], index: 4, kind: input, shape index: {}]
  %s5 = inlined_call_operand.vmem [shape: bf16[128,1024], index: 5, kind: input, shape index: {}]
  %s6 = inlined_call_operand.vmem [shape: f32[1,1024], index: 6, kind: input, shape index: {}]
  %s7 = inlined_call_operand.hbm [shape: f32[2,1,1024], index: 7, kind: output, shape index: {}]
  %s8 = sld [smem:[#allocation0]]
  $region69: #{tpu_custom_call.1} parent=0
    _
  %s10 = ssub.s32 1, %s8
  %s11 = scalar_select 0, %s10, %s8
  $region1: #{tpu_custom_call.1} parent=0
    #allocation3 [shape = 'u8[8192]{0}', space=vmem, size = 0x2000, scoped, tag = 'output window, operand 0']
    #allocation4 [shape = 's32[2]{0}', space=sflag, size = 0x8, scoped, tag = 'scoped memory for tpu_custom_call.1']
    %12 = vsyncpa [#allocation4], 0
    %s13 = scalar_lea.sflag [#allocation4], 1
    %14 = vsyncpa %s13, 0
    loop: start=0, step=1, limit=10
    $region2: #{tpu_custom_call.1} parent=1 // loop_pre_header
      _
    $region3: #{tpu_custom_call.1} parent=1 // loop_header
      %s16 = sphi 0, %s20
      %p17 = scmp.ge.s32.totalorder %s16, 10
      %s23 = sphi 0, %s35
      %s24 = sphi 0, %s31
      %s25 = sphi 0, %s23
      %s26 = sphi 0, %s24
      %s27 = sphi 0, %s25
      %s28 = sphi 0, %s26
      %s40 = sphi 0, %s42
      %s43 = sphi 0, %s40
      %s44 = sphi 0, %s43
      %s60 = sphi 0, %s44
      %s64 = sphi 0, %s64
      %s66 = sphi 0, %s64
      %s67 = sphi 0, %s66
      %s81 = sphi 0, %s67
      %s85 = sphi 0, %s85
      %s87 = sphi 0, %s85
      %s88 = sphi 0, %s87
      %s102 = sphi 0, %s88
      %s106 = sphi 0, %s106
      %s108 = sphi 0, %s106
      %s109 = sphi 0, %s108
      %s123 = sphi 0, %s109
      %s127 = sphi 0, %s127
      %s129 = sphi 0, %s127
      %s130 = sphi 0, %s129
      %s144 = sphi 0, %s130
      %s148 = sphi 0, %s148
      %s150 = sphi 0, %s148
      %s151 = sphi 0, %s150
      %s165 = sphi 0, %s151
      %s169 = sphi 0, %s169
      %s171 = sphi 0, %s169
      %s172 = sphi 0, %s171
      %s186 = sphi 0, %s172
      %s192 = sphi 0, %s194
      %s195 = sphi 0, %s192
      %s196 = sphi 0, %s195
      %s212 = sphi 0, %s196
    $region4: #{tpu_custom_call.1} parent=1 // loop_header_branch
      %19 = sbr.rel (%p17) target = $region8
    $region5: #{tpu_custom_call.1} parent=1 // loop_body
      %s21 = ssub.s32 %s16, 1
      %s22 = ssub.s32 %s16, 2
      %s29 = sadd.s32 1, %s24
      %p30 = scmp.ge.s32.totalorder %s29, 4
      %s31 = scalar_select %p30, 0, %s29
      %s32 = sadd.s32 1, %s23
      %s33 = scalar_select %p30, %s32, %s23
      %p34 = scmp.ge.s32.totalorder %s33, 2
      %s35 = scalar_select %p34, 0, %s33
      %s36 = ssub.s32 %s23, %s35
      %s37 = ssub.s32 %s24, %s31
      %s38 = sor.u32 %s36, %s37
      %p39 = scmp.eq.s32.totalorder %s38, 0
      %s41 = sadd.s32 %s40, 1
      %s42 = scalar_select %p39, %s40, %s41
      %p45 = pneg %p39
      %p46 = scmp.eq.s32.totalorder %s16, 7
      %p47 = por %p45, %p46
      %p48 = scmp.ne.s32.totalorder %s40, %s43
      %p49 = scmp.eq.s32.totalorder %s16, 0
      %p50 = por %p48, %p49
      %p51 = scmp.ne.s32.totalorder %s40, %s43
      %p52 = scmp.eq.s32.totalorder %s21, 7
      %p53 = por %p51, %p52
      %p54 = scmp.ne.s32.totalorder %s43, %s44
      %p55 = scmp.eq.s32.totalorder %s21, 0
      %p56 = por %p54, %p55
      %p57 = scmp.ne.s32.totalorder %s43, %s44
      %p58 = scmp.eq.s32.totalorder %s22, 7
      %p59 = por %p57, %p58
      %p61 = scmp.ne.s32.totalorder %s44, %s60
      %p62 = scmp.eq.s32.totalorder %s22, 0
      %p63 = por %p61, %p62
      %s65 = sadd.s32 %s64, 1
      %p68 = scmp.eq.s32.totalorder %s16, 7
      %p69 = scmp.ne.s32.totalorder %s64, %s66
      %p70 = scmp.eq.s32.totalorder %s16, 0
      %p71 = por %p69, %p70
      %p72 = scmp.ne.s32.totalorder %s64, %s66
      %p73 = scmp.eq.s32.totalorder %s21, 7
      %p74 = por %p72, %p73
      %p75 = scmp.ne.s32.totalorder %s66, %s67
      %p76 = scmp.eq.s32.totalorder %s21, 0
      %p77 = por %p75, %p76
      %p78 = scmp.ne.s32.totalorder %s66, %s67
      %p79 = scmp.eq.s32.totalorder %s22, 7
      %p80 = por %p78, %p79
      %p82 = scmp.ne.s32.totalorder %s67, %s81
      %p83 = scmp.eq.s32.totalorder %s22, 0
      %p84 = por %p82, %p83
      %s86 = sadd.s32 %s85, 1
      %p89 = scmp.eq.s32.totalorder %s16, 7
      %p90 = scmp.ne.s32.totalorder %s85, %s87
      %p91 = scmp.eq.s32.totalorder %s16, 0
      %p92 = por %p90, %p91
      %p93 = scmp.ne.s32.totalorder %s85, %s87
      %p94 = scmp.eq.s32.totalorder %s21, 7
      %p95 = por %p93, %p94
      %p96 = scmp.ne.s32.totalorder %s87, %s88
      %p97 = scmp.eq.s32.totalorder %s21, 0
      %p98 = por %p96, %p97
      %p99 = scmp.ne.s32.totalorder %s87, %s88
      %p100 = scmp.eq.s32.totalorder %s22, 7
      %p101 = por %p99, %p100
      %p103 = scmp.ne.s32.totalorder %s88, %s102
      %p104 = scmp.eq.s32.totalorder %s22, 0
      %p105 = por %p103, %p104
      %s107 = sadd.s32 %s106, 1
      %p110 = scmp.eq.s32.totalorder %s16, 7
      %p111 = scmp.ne.s32.totalorder %s106, %s108
      %p112 = scmp.eq.s32.totalorder %s16, 0
      %p113 = por %p111, %p112
      %p114 = scmp.ne.s32.totalorder %s106, %s108
      %p115 = scmp.eq.s32.totalorder %s21, 7
      %p116 = por %p114, %p115
      %p117 = scmp.ne.s32.totalorder %s108, %s109
      %p118 = scmp.eq.s32.totalorder %s21, 0
      %p119 = por %p117, %p118
      %p120 = scmp.ne.s32.totalorder %s108, %s109
      %p121 = scmp.eq.s32.totalorder %s22, 7
      %p122 = por %p120, %p121
      %p124 = scmp.ne.s32.totalorder %s109, %s123
      %p125 = scmp.eq.s32.totalorder %s22, 0
      %p126 = por %p124, %p125
      %s128 = sadd.s32 %s127, 1
      %p131 = scmp.eq.s32.totalorder %s16, 7
      %p132 = scmp.ne.s32.totalorder %s127, %s129
      %p133 = scmp.eq.s32.totalorder %s16, 0
      %p134 = por %p132, %p133
      %p135 = scmp.ne.s32.totalorder %s127, %s129
      %p136 = scmp.eq.s32.totalorder %s21, 7
      %p137 = por %p135, %p136
      %p138 = scmp.ne.s32.totalorder %s129, %s130
      %p139 = scmp.eq.s32.totalorder %s21, 0
      %p140 = por %p138, %p139
      %p141 = scmp.ne.s32.totalorder %s129, %s130
      %p142 = scmp.eq.s32.totalorder %s22, 7
      %p143 = por %p141, %p142
      %p145 = scmp.ne.s32.totalorder %s130, %s144
      %p146 = scmp.eq.s32.totalorder %s22, 0
      %p147 = por %p145, %p146
      %s149 = sadd.s32 %s148, 1
      %p152 = scmp.eq.s32.totalorder %s16, 7
      %p153 = scmp.ne.s32.totalorder %s148, %s150
      %p154 = scmp.eq.s32.totalorder %s16, 0
      %p155 = por %p153, %p154
      %p156 = scmp.ne.s32.totalorder %s148, %s150
      %p157 = scmp.eq.s32.totalorder %s21, 7
      %p158 = por %p156, %p157
      %p159 = scmp.ne.s32.totalorder %s150, %s151
      %p160 = scmp.eq.s32.totalorder %s21, 0
      %p161 = por %p159, %p160
      %p162 = scmp.ne.s32.totalorder %s150, %s151
      %p163 = scmp.eq.s32.totalorder %s22, 7
      %p164 = por %p162, %p163
      %p166 = scmp.ne.s32.totalorder %s151, %s165
      %p167 = scmp.eq.s32.totalorder %s22, 0
      %p168 = por %p166, %p167
      %s170 = sadd.s32 %s169, 1
      %p173 = scmp.eq.s32.totalorder %s16, 7
      %p174 = scmp.ne.s32.totalorder %s169, %s171
      %p175 = scmp.eq.s32.totalorder %s16, 0
      %p176 = por %p174, %p175
      %p177 = scmp.ne.s32.totalorder %s169, %s171
      %p178 = scmp.eq.s32.totalorder %s21, 7
      %p179 = por %p177, %p178
      %p180 = scmp.ne.s32.totalorder %s171, %s172
      %p181 = scmp.eq.s32.totalorder %s21, 0
      %p182 = por %p180, %p181
      %p183 = scmp.ne.s32.totalorder %s171, %s172
      %p184 = scmp.eq.s32.totalorder %s22, 7
      %p185 = por %p183, %p184
      %p187 = scmp.ne.s32.totalorder %s172, %s186
      %p188 = scmp.eq.s32.totalorder %s22, 0
      %p189 = por %p187, %p188
      %s190 = ssub.s32 %s23, %s35
      %p191 = scmp.eq.s32.totalorder %s190, 0
      %s193 = sadd.s32 %s192, 1
      %s194 = scalar_select %p191, %s192, %s193
      %p197 = pneg %p191
      %p198 = scmp.eq.s32.totalorder %s16, 7
      %p199 = por %p197, %p198
      %p200 = scmp.ne.s32.totalorder %s192, %s195
      %p201 = scmp.eq.s32.totalorder %s16, 0
      %p202 = por %p200, %p201
      %p203 = scmp.ne.s32.totalorder %s192, %s195
      %p204 = scmp.eq.s32.totalorder %s21, 7
      %p205 = por %p203, %p204
      %p206 = scmp.ne.s32.totalorder %s195, %s196
      %p207 = scmp.eq.s32.totalorder %s21, 0
      %p208 = por %p206, %p207
      %p209 = scmp.ne.s32.totalorder %s195, %s196
      %p210 = scmp.eq.s32.totalorder %s22, 7
      %p211 = por %p209, %p210
      %p213 = scmp.ne.s32.totalorder %s196, %s212
      %p214 = scmp.eq.s32.totalorder %s22, 0
      %p215 = por %p213, %p214
      %p216 = scmp.le.s32.totalorder 1, %s16
      %p217 = scmp.lt.s32.totalorder %s16, 9
      %p218 = pnand %p216, %p217
      %p219 = pneg %p218
      // Predicated region
      $region9: #{tpu_custom_call.1} parent=5 // pred_check
        _
      $region10: #{tpu_custom_call.1} parent=5 // pred_check_branch
        %221 = sbr.rel (%p218) target = $region12
      $region11: #{tpu_custom_call.1} parent=5 // pred_region
        %s222 = ssub.s32 %s16, 1
        // Predicated region
        $region13: #{tpu_custom_call.1} parent=11 // pred_check
          %p223 = pneg %p77
        $region14: #{tpu_custom_call.1} parent=11 // pred_check_branch
          %225 = sbr.rel (%p223) target = $region16
        $region15: #{tpu_custom_call.1} parent=11 // pred_region
          _
        $region16: #{tpu_custom_call.1} parent=11 // pred_fallthru
          _
        // Predicated region
        $region17: #{tpu_custom_call.1} parent=11 // pred_check
          %p226 = pneg %p98
        $region18: #{tpu_custom_call.1} parent=11 // pred_check_branch
          %228 = sbr.rel (%p226) target = $region20
        $region19: #{tpu_custom_call.1} parent=11 // pred_region
          _
        $region20: #{tpu_custom_call.1} parent=11 // pred_fallthru
          _
        // Predicated region
        $region21: #{tpu_custom_call.1} parent=11 // pred_check
          %p229 = pneg %p119
        $region22: #{tpu_custom_call.1} parent=11 // pred_check_branch
          %231 = sbr.rel (%p229) target = $region24
        $region23: #{tpu_custom_call.1} parent=11 // pred_region
          _
        $region24: #{tpu_custom_call.1} parent=11 // pred_fallthru
          _
        // Predicated region
        $region25: #{tpu_custom_call.1} parent=11 // pred_check
          %p232 = pneg %p140
        $region26: #{tpu_custom_call.1} parent=11 // pred_check_branch
          %234 = sbr.rel (%p232) target = $region28
        $region27: #{tpu_custom_call.1} parent=11 // pred_region
          _
        $region28: #{tpu_custom_call.1} parent=11 // pred_fallthru
          _
        // Predicated region
        $region29: #{tpu_custom_call.1} parent=11 // pred_check
          %p235 = pneg %p161
        $region30: #{tpu_custom_call.1} parent=11 // pred_check_branch
          %237 = sbr.rel (%p235) target = $region32
        $region31: #{tpu_custom_call.1} parent=11 // pred_region
          _
        $region32: #{tpu_custom_call.1} parent=11 // pred_fallthru
          _
        // Predicated region
        $region33: #{tpu_custom_call.1} parent=11 // pred_check
          %p238 = pneg %p182
        $region34: #{tpu_custom_call.1} parent=11 // pred_check_branch
          %240 = sbr.rel (%p238) target = $region36
        $region35: #{tpu_custom_call.1} parent=11 // pred_region
          _
        $region36: #{tpu_custom_call.1} parent=11 // pred_fallthru
          _
      $region12: #{tpu_custom_call.1} parent=5 // pred_fallthru
        _
      %p241 = scmp.lt.s32.totalorder %s16, 8
      // Predicated region
      $region37: #{tpu_custom_call.1} parent=5 // pred_check
        %p242 = pneg %p241
      $region38: #{tpu_custom_call.1} parent=5 // pred_check_branch
        %244 = sbr.rel (%p242) target = $region40
      $region39: #{tpu_custom_call.1} parent=5 // pred_region
        // Predicated region
        $region41: #{tpu_custom_call.1} parent=39 // pred_check
          %p245 = pneg %p50
        $region42: #{tpu_custom_call.1} parent=39 // pred_check_branch
          %247 = sbr.rel (%p245) target = $region44
        $region43: #{tpu_custom_call.1} parent=39 // pred_region
          %s248 = smul.u32 16, %s24
          %p249 = scmp.lt.s32.totalorder %s23, 1
          %s250 = scalar_select %p249, %s23, 1
          %p251 = scmp.lt.s32.totalorder %s248, 63
          %s252 = scalar_select %p251, %s248, 63
          %s253 = smul.addr %s250, 64
          %s254 = sadd.s32 %s252, %s253
          %s255 = smul.addr %s254, 8
          %s256 = scalar_lea.vmem %s0, %s255
          %s257 = smul.u32 16, %s24
        $region44: #{tpu_custom_call.1} parent=39 // pred_fallthru
          _
      $region40: #{tpu_custom_call.1} parent=5 // pred_fallthru
        _
      %p258 = scmp.le.s32.totalorder 1, %s16
      %p259 = scmp.lt.s32.totalorder %s16, 9
      %p260 = pnand %p258, %p259
      %p261 = pneg %p260
      // Predicated region
      $region45: #{tpu_custom_call.1} parent=5 // pred_check
        _
      $region46: #{tpu_custom_call.1} parent=5 // pred_check_branch
        %263 = sbr.rel (%p260) target = $region48
      $region47: #{tpu_custom_call.1} parent=5 // pred_region
        %s264 = ssub.s32 %s16, 1
        %s265 = smul.u32 16, %s26
        %p266 = scmp.lt.s32.totalorder %s25, 1
        %s267 = scalar_select %p266, %s25, 1
        %p268 = scmp.lt.s32.totalorder %s265, 63
        %s269 = scalar_select %p268, %s265, 63
        %s270 = smul.addr %s267, 64
        %s271 = sadd.s32 %s269, %s270
        %s272 = smul.addr %s271, 8
        %s273 = scalar_lea.vmem %s0, %s272
        %p274 = pneg %p56
        %p275 = pneg %p53
        %p276 = pneg %p77
        %p277 = pneg %p74
        %p278 = pneg %p98
        %p279 = pneg %p95
        %p280 = pneg %p119
        %p281 = pneg %p116
        %p282 = pneg %p140
        %p283 = pneg %p137
        %p284 = pneg %p161
        %p285 = pneg %p158
        %p286 = pneg %p182
        %p287 = pneg %p179
        %p288 = pneg %p208
        %p289 = pneg %p205
        %s290 = sand.u32 %s195, 1
        %s291 = scalar_lea.sflag [#allocation4], %s290
        %s292 = sand.u32 %s195, 1
        %s293 = smul.addr %s292, 8
        %s294 = scalar_lea.vmem [#allocation3], %s293
        %s295 = smul.u32 16, %s26
        %p296 = scmp.lt.s32.totalorder %s25, 1
        %s297 = scalar_select %p296, %s25, 1
        %p298 = scmp.lt.s32.totalorder %s295, 63
        %s299 = scalar_select %p298, %s295, 63
        %s300 = smul.addr %s297, 64
        %s301 = sadd.s32 %s299, %s300
        %s302 = smul.addr %s301, 8
        %s303 = scalar_lea.vmem %s0, %s302
        %s304 = smul.u32 16, %s26
        %v306 = vld [vmem:[%s303] sm:$0xff]
        %v307 = vld [vmem:[%s303 + $0x8] sm:$0xff]
        %v308 = vld [vmem:[%s303 + $0x10] sm:$0xff]
        %v309 = vld [vmem:[%s303 + $0x18] sm:$0xff]
        %v310 = vld [vmem:[%s303 + $0x20] sm:$0xff]
        %v311 = vld [vmem:[%s303 + $0x28] sm:$0xff]
        %v312 = vld [vmem:[%s303 + $0x30] sm:$0xff]
        %v313 = vld [vmem:[%s303 + $0x38] sm:$0xff]
        %v314 = vld [vmem:[%s303 + $0x40] sm:$0xff]
        %v315 = vld [vmem:[%s303 + $0x48] sm:$0xff]
        %v316 = vld [vmem:[%s303 + $0x50] sm:$0xff]
        %v317 = vld [vmem:[%s303 + $0x58] sm:$0xff]
        %v318 = vld [vmem:[%s303 + $0x60] sm:$0xff]
        %v319 = vld [vmem:[%s303 + $0x68] sm:$0xff]
        %v320 = vld [vmem:[%s303 + $0x70] sm:$0xff]
        %v321 = vld [vmem:[%s303 + $0x78] sm:$0xff]
        %v322 = vld [vmem:[%s1] sm:$0x7]
        %v323 = vld [vmem:[%s2] sm:$0x1]
        %v325 = vperm.slane %v323, 0
        %vm327 = vcmask 23552
        %v329 = vsel %vm327, %v306, 0
        %v332 = vsel %vm327, %v307, 0
        %v335 = vsel %vm327, %v308, 0
        %v338 = vsel %vm327, %v309, 0
        %v341 = vsel %vm327, %v310, 0
        %v344 = vsel %vm327, %v311, 0
        %v347 = vsel %vm327, %v312, 0
        %v350 = vsel %vm327, %v313, 0
        %v353 = vsel %vm327, %v314, 0
        %v356 = vsel %vm327, %v315, 0
        %v359 = vsel %vm327, %v316, 0
        %v362 = vsel %vm327, %v317, 0
        %v365 = vsel %vm327, %v318, 0
        %v368 = vsel %vm327, %v319, 0
        %v371 = vsel %vm327, %v320, 0
        %v374 = vsel %vm327, %v321, 0
        %vm376 = vcmask 1042432
        %v378 = vsel %vm376, %v322, 0
        %380 = vmatpush.msra.mxu0 0.0
        %381 = vmatpush.msra.mxu0 0.0
        %382 = vmatpush.msra.mxu0 0.0
        %383 = vmatpush.msra.mxu0 0.0
        %384 = vmatpush.msra.mxu0 0.0
        %385 = vmatpush.msra.mxu0 0.0
        %386 = vmatpush.msra.mxu0 0.0
        %387 = vmatpush.msra.mxu0 0.0
        %388 = vmatpush.msra.mxu0 0.0
        %389 = vmatpush.msra.mxu0 0.0
        %390 = vmatpush.msra.mxu0 0.0
        %391 = vmatpush.msra.mxu0 0.0
        %392 = vmatpush.msra.mxu0 0.0
        %393 = vmatpush.msra.mxu0 0.0
        %394 = vmatpush.msra.mxu0 0.0
        %395 = vmatpush.msra.mxu0 %v378
        %396 = vmatmul.f32.gmra.mxu0 %v329
        %v397 = vpop.f32.mrf.mxu0
        %v398 = vadd.f32 %v325, %v397
        %399 = vmatmul.f32.gmra.mxu0 %v332
        %v400 = vpop.f32.mrf.mxu0
        %v401 = vadd.f32 %v325, %v400
        %402 = vmatmul.f32.gmra.mxu0 %v335
        %v403 = vpop.f32.mrf.mxu0
        %v404 = vadd.f32 %v325, %v403
        %405 = vmatmul.f32.gmra.mxu0 %v338
        %v406 = vpop.f32.mrf.mxu0
        %v407 = vadd.f32 %v325, %v406
        %408 = vmatmul.f32.gmra.mxu0 %v341
        %v409 = vpop.f32.mrf.mxu0
        %v410 = vadd.f32 %v325, %v409
        %411 = vmatmul.f32.gmra.mxu0 %v344
        %v412 = vpop.f32.mrf.mxu0
        %v413 = vadd.f32 %v325, %v412
        %414 = vmatmul.f32.gmra.mxu0 %v347
        %v415 = vpop.f32.mrf.mxu0
        %v416 = vadd.f32 %v325, %v415
        %417 = vmatmul.f32.gmra.mxu0 %v350
        %v418 = vpop.f32.mrf.mxu0
        %v419 = vadd.f32 %v325, %v418
        %420 = vmatmul.f32.gmra.mxu0 %v353
        %v421 = vpop.f32.mrf.mxu0
        %v422 = vadd.f32 %v325, %v421
        %423 = vmatmul.f32.gmra.mxu0 %v356
        %v424 = vpop.f32.mrf.mxu0
        %v425 = vadd.f32 %v325, %v424
        %426 = vmatmul.f32.gmra.mxu0 %v359
        %v427 = vpop.f32.mrf.mxu0
        %v428 = vadd.f32 %v325, %v427
        %429 = vmatmul.f32.gmra.mxu0 %v362
        %v430 = vpop.f32.mrf.mxu0
        %v431 = vadd.f32 %v325, %v430
        %432 = vmatmul.f32.gmra.mxu0 %v365
        %v433 = vpop.f32.mrf.mxu0
        %v434 = vadd.f32 %v325, %v433
        %435 = vmatmul.f32.gmra.mxu0 %v368
        %v436 = vpop.f32.mrf.mxu0
        %v437 = vadd.f32 %v325, %v436
        %438 = vmatmul.f32.gmra.mxu0 %v371
        %v439 = vpop.f32.mrf.mxu0
        %v440 = vadd.f32 %v325, %v439
        %441 = vmatmul.f32.gmra.mxu0 %v374
        %v442 = vpop.f32.mrf.mxu0
        %v443 = vadd.f32 %v325, %v442
        %444 = vdwg.mxu0
        %v445 = vmax.f32 %v398, 0.0
        %v446 = vmax.f32 %v401, 0.0
        %v447 = vmax.f32 %v404, 0.0
        %v448 = vmax.f32 %v407, 0.0
        %v449 = vmax.f32 %v410, 0.0
        %v450 = vmax.f32 %v413, 0.0
        %v451 = vmax.f32 %v416, 0.0
        %v452 = vmax.f32 %v419, 0.0
        %v453 = vmax.f32 %v422, 0.0
        %v454 = vmax.f32 %v425, 0.0
        %v455 = vmax.f32 %v428, 0.0
        %v456 = vmax.f32 %v431, 0.0
        %v457 = vmax.f32 %v434, 0.0
        %v458 = vmax.f32 %v437, 0.0
        %v459 = vmax.f32 %v440, 0.0
        %v460 = vmax.f32 %v443, 0.0
        %v461 = vpack.c.bf16 %v446, %v445
        %v462 = vpack.c.bf16 %v448, %v447
        %v463 = vpack.c.bf16 %v450, %v449
        %v464 = vpack.c.bf16 %v452, %v451
        %v465 = vpack.c.bf16 %v454, %v453
        %v466 = vpack.c.bf16 %v456, %v455
        %v467 = vpack.c.bf16 %v458, %v457
        %v468 = vpack.c.bf16 %v460, %v459
        %v469 = vld [vmem:[%s3] sm:$0xf]
        %v470 = vld [vmem:[%s3 + $0x4] sm:$0xf]
        %v471 = vld [vmem:[%s3 + $0x8] sm:$0xf]
        %v472 = vld [vmem:[%s3 + $0xc] sm:$0xf]
        %v473 = vld [vmem:[%s3 + $0x10] sm:$0xf]
        %v474 = vld [vmem:[%s3 + $0x14] sm:$0xf]
        %v475 = vld [vmem:[%s3 + $0x18] sm:$0xf]
        %v476 = vld [vmem:[%s3 + $0x1c] sm:$0xf]
        %v477 = vld [vmem:[%s4] sm:$0x1]
        %v479 = vperm.slane %v477, 0
        %v489 = vunpack.c.l.b16 %v469
        %v490 = vunpack.c.l.b16 %v470
        %v491 = vunpack.c.l.b16 %v471
        %v492 = vunpack.c.l.b16 %v472
        %v493 = vunpack.c.l.b16 %v473
        %v494 = vunpack.c.l.b16 %v474
        %v495 = vunpack.c.l.b16 %v475
        %v496 = vunpack.c.l.b16 %v476
        %v497 = vpack.c.b16 %v490, %v489
        %v498 = vpack.c.b16 %v492, %v491
        %v499 = vpack.c.b16 %v494, %v493
        %v500 = vpack.c.b16 %v496, %v495
        %vm505 = vcmask 523264
        %v507 = vsel %vm505, %v461, 0
        %v510 = vsel %vm505, %v462, 0
        %v513 = vsel %vm505, %v463, 0
        %v516 = vsel %vm505, %v464, 0
        %v519 = vsel %vm505, %v465, 0
        %v522 = vsel %vm505, %v466, 0
        %v525 = vsel %vm505, %v467, 0
        %v528 = vsel %vm505, %v468, 0
        %530 = vmatpush.bf16.msra.mxu0 0
        %531 = vmatpush.bf16.msra.mxu0 0
        %532 = vmatpush.bf16.msra.mxu0 0
        %533 = vmatpush.bf16.msra.mxu0 0
        %534 = vmatpush.bf16.msra.mxu0 %v500
        %535 = vmatpush.bf16.msra.mxu0 %v499
        %536 = vmatpush.bf16.msra.mxu0 %v498
        %537 = vmatpush.bf16.msra.mxu0 %v497
        %538 = vmatmul.bf16.gmra.mxu0 %v507
        %v539 = vpop.f32.mrf.mxu0
        %v540 = vadd.f32 %v479, %v539
        %v541 = vpop.f32.mrf.mxu0
        %v542 = vadd.f32 %v479, %v541
        %543 = vmatmul.bf16.gmra.mxu0 %v510
        %v544 = vpop.f32.mrf.mxu0
        %v545 = vadd.f32 %v479, %v544
        %v546 = vpop.f32.mrf.mxu0
        %v547 = vadd.f32 %v479, %v546
        %548 = vmatmul.bf16.gmra.mxu0 %v513
        %v549 = vpop.f32.mrf.mxu0
        %v550 = vadd.f32 %v479, %v549
        %v551 = vpop.f32.mrf.mxu0
        %v552 = vadd.f32 %v479, %v551
        %553 = vmatmul.bf16.gmra.mxu0 %v516
        %v554 = vpop.f32.mrf.mxu0
        %v555 = vadd.f32 %v479, %v554
        %v556 = vpop.f32.mrf.mxu0
        %v557 = vadd.f32 %v479, %v556
        %558 = vmatmul.bf16.gmra.mxu0 %v519
        %v559 = vpop.f32.mrf.mxu0
        %v560 = vadd.f32 %v479, %v559
        %v561 = vpop.f32.mrf.mxu0
        %v562 = vadd.f32 %v479, %v561
        %563 = vmatmul.bf16.gmra.mxu0 %v522
        %v564 = vpop.f32.mrf.mxu0
        %v565 = vadd.f32 %v479, %v564
        %v566 = vpop.f32.mrf.mxu0
        %v567 = vadd.f32 %v479, %v566
        %568 = vmatmul.bf16.gmra.mxu0 %v525
        %v569 = vpop.f32.mrf.mxu0
        %v570 = vadd.f32 %v479, %v569
        %v571 = vpop.f32.mrf.mxu0
        %v572 = vadd.f32 %v479, %v571
        %573 = vmatmul.bf16.gmra.mxu0 %v528
        %v574 = vpop.f32.mrf.mxu0
        %v575 = vadd.f32 %v479, %v574
        %v576 = vpop.f32.mrf.mxu0
        %v577 = vadd.f32 %v479, %v576
        %578 = vdwg.mxu0
        %v579 = vmax.f32 %v540, 0.0
        %v580 = vmax.f32 %v542, 0.0
        %v581 = vmax.f32 %v545, 0.0
        %v582 = vmax.f32 %v547, 0.0
        %v583 = vmax.f32 %v550, 0.0
        %v584 = vmax.f32 %v552, 0.0
        %v585 = vmax.f32 %v555, 0.0
        %v586 = vmax.f32 %v557, 0.0
        %v587 = vmax.f32 %v560, 0.0
        %v588 = vmax.f32 %v562, 0.0
        %v589 = vmax.f32 %v565, 0.0
        %v590 = vmax.f32 %v567, 0.0
        %v591 = vmax.f32 %v570, 0.0
        %v592 = vmax.f32 %v572, 0.0
        %v593 = vmax.f32 %v575, 0.0
        %v594 = vmax.f32 %v577, 0.0
        %v595 = vpack.c.bf16 %v580, %v579
        %v596 = vpack.c.bf16 %v582, %v581
        %v597 = vpack.c.bf16 %v584, %v583
        %v598 = vpack.c.bf16 %v586, %v585
        %v599 = vpack.c.bf16 %v588, %v587
        %v600 = vpack.c.bf16 %v590, %v589
        %v601 = vpack.c.bf16 %v592, %v591
        %v602 = vpack.c.bf16 %v594, %v593
        %v603 = vld [vmem:[%s5] sm:$0xff]
        %v604 = vld [vmem:[%s5 + $0x8] sm:$0xff]
        %v605 = vld [vmem:[%s5 + $0x10] sm:$0xff]
        %v606 = vld [vmem:[%s5 + $0x18] sm:$0xff]
        %v607 = vld [vmem:[%s5 + $0x20] sm:$0xff]
        %v608 = vld [vmem:[%s5 + $0x28] sm:$0xff]
        %v609 = vld [vmem:[%s5 + $0x30] sm:$0xff]
        %v610 = vld [vmem:[%s5 + $0x38] sm:$0xff]
        %v611 = vld [vmem:[%s5 + $0x40] sm:$0xff]
        %v612 = vld [vmem:[%s5 + $0x48] sm:$0xff]
        %v613 = vld [vmem:[%s5 + $0x50] sm:$0xff]
        %v614 = vld [vmem:[%s5 + $0x58] sm:$0xff]
        %v615 = vld [vmem:[%s5 + $0x60] sm:$0xff]
        %v616 = vld [vmem:[%s5 + $0x68] sm:$0xff]
        %v617 = vld [vmem:[%s5 + $0x70] sm:$0xff]
        %v618 = vld [vmem:[%s5 + $0x78] sm:$0xff]
        %v619 = vld [vmem:[%s5 + $0x80] sm:$0xff]
        %v620 = vld [vmem:[%s5 + $0x88] sm:$0xff]
        %v621 = vld [vmem:[%s5 + $0x90] sm:$0xff]
        %v622 = vld [vmem:[%s5 + $0x98] sm:$0xff]
        %v623 = vld [vmem:[%s5 + $0xa0] sm:$0xff]
        %v624 = vld [vmem:[%s5 + $0xa8] sm:$0xff]
        %v625 = vld [vmem:[%s5 + $0xb0] sm:$0xff]
        %v626 = vld [vmem:[%s5 + $0xb8] sm:$0xff]
        %v627 = vld [vmem:[%s5 + $0xc0] sm:$0xff]
        %v628 = vld [vmem:[%s5 + $0xc8] sm:$0xff]
        %v629 = vld [vmem:[%s5 + $0xd0] sm:$0xff]
        %v630 = vld [vmem:[%s5 + $0xd8] sm:$0xff]
        %v631 = vld [vmem:[%s5 + $0xe0] sm:$0xff]
        %v632 = vld [vmem:[%s5 + $0xe8] sm:$0xff]
        %v633 = vld [vmem:[%s5 + $0xf0] sm:$0xff]
        %v634 = vld [vmem:[%s5 + $0xf8] sm:$0xff]
        %v635 = vld [vmem:[%s5 + $0x100] sm:$0xff]
        %v636 = vld [vmem:[%s5 + $0x108] sm:$0xff]
        %v637 = vld [vmem:[%s5 + $0x110] sm:$0xff]
        %v638 = vld [vmem:[%s5 + $0x118] sm:$0xff]
        %v639 = vld [vmem:[%s5 + $0x120] sm:$0xff]
        %v640 = vld [vmem:[%s5 + $0x128] sm:$0xff]
        %v641 = vld [vmem:[%s5 + $0x130] sm:$0xff]
        %v642 = vld [vmem:[%s5 + $0x138] sm:$0xff]
        %v643 = vld [vmem:[%s5 + $0x140] sm:$0xff]
        %v644 = vld [vmem:[%s5 + $0x148] sm:$0xff]
        %v645 = vld [vmem:[%s5 + $0x150] sm:$0xff]
        %v646 = vld [vmem:[%s5 + $0x158] sm:$0xff]
        %v647 = vld [vmem:[%s5 + $0x160] sm:$0xff]
        %v648 = vld [vmem:[%s5 + $0x168] sm:$0xff]
        %v649 = vld [vmem:[%s5 + $0x170] sm:$0xff]
        %v650 = vld [vmem:[%s5 + $0x178] sm:$0xff]
        %v651 = vld [vmem:[%s5 + $0x180] sm:$0xff]
        %v652 = vld [vmem:[%s5 + $0x188] sm:$0xff]
        %v653 = vld [vmem:[%s5 + $0x190] sm:$0xff]
        %v654 = vld [vmem:[%s5 + $0x198] sm:$0xff]
        %v655 = vld [vmem:[%s5 + $0x1a0] sm:$0xff]
        %v656 = vld [vmem:[%s5 + $0x1a8] sm:$0xff]
        %v657 = vld [vmem:[%s5 + $0x1b0] sm:$0xff]
        %v658 = vld [vmem:[%s5 + $0x1b8] sm:$0xff]
        %v659 = vld [vmem:[%s5 + $0x1c0] sm:$0xff]
        %v660 = vld [vmem:[%s5 + $0x1c8] sm:$0xff]
        %v661 = vld [vmem:[%s5 + $0x1d0] sm:$0xff]
        %v662 = vld [vmem:[%s5 + $0x1d8] sm:$0xff]
        %v663 = vld [vmem:[%s5 + $0x1e0] sm:$0xff]
        %v664 = vld [vmem:[%s5 + $0x1e8] sm:$0xff]
        %v665 = vld [vmem:[%s5 + $0x1f0] sm:$0xff]
        %v666 = vld [vmem:[%s5 + $0x1f8] sm:$0xff]
        %v667 = vld [vmem:[%s6] sm:$0xff]
        %v669 = vperm.slane %v667, 0
        %v670 = vperm.slane %v667, 1
        %v671 = vperm.slane %v667, 2
        %v672 = vperm.slane %v667, 3
        %v673 = vperm.slane %v667, 4
        %v674 = vperm.slane %v667, 5
        %v675 = vperm.slane %v667, 6
        %v676 = vperm.slane %v667, 7
        %v749 = vunpack.c.l.b16 %v603
        %v750 = vunpack.c.h.b16 %v603
        %v751 = vunpack.c.l.b16 %v604
        %v752 = vunpack.c.h.b16 %v604
        %v753 = vunpack.c.l.b16 %v605
        %v754 = vunpack.c.h.b16 %v605
        %v755 = vunpack.c.l.b16 %v606
        %v756 = vunpack.c.h.b16 %v606
        %v757 = vunpack.c.l.b16 %v607
        %v758 = vunpack.c.h.b16 %v607
        %v759 = vunpack.c.l.b16 %v608
        %v760 = vunpack.c.h.b16 %v608
        %v761 = vunpack.c.l.b16 %v609
        %v762 = vunpack.c.h.b16 %v609
        %v763 = vunpack.c.l.b16 %v610
        %v764 = vunpack.c.h.b16 %v610
        %v765 = vunpack.c.l.b16 %v611
        %v766 = vunpack.c.h.b16 %v611
        %v767 = vunpack.c.l.b16 %v612
        %v768 = vunpack.c.h.b16 %v612
        %v769 = vunpack.c.l.b16 %v613
        %v770 = vunpack.c.h.b16 %v613
        %v771 = vunpack.c.l.b16 %v614
        %v772 = vunpack.c.h.b16 %v614
        %v773 = vunpack.c.l.b16 %v615
        %v774 = vunpack.c.h.b16 %v615
        %v775 = vunpack.c.l.b16 %v616
        %v776 = vunpack.c.h.b16 %v616
        %v777 = vunpack.c.l.b16 %v617
        %v778 = vunpack.c.h.b16 %v617
        %v779 = vunpack.c.l.b16 %v618
        %v780 = vunpack.c.h.b16 %v618
        %v781 = vunpack.c.l.b16 %v619
        %v782 = vunpack.c.h.b16 %v619
        %v783 = vunpack.c.l.b16 %v620
        %v784 = vunpack.c.h.b16 %v620
        %v785 = vunpack.c.l.b16 %v621
        %v786 = vunpack.c.h.b16 %v621
        %v787 = vunpack.c.l.b16 %v622
        %v788 = vunpack.c.h.b16 %v622
        %v789 = vunpack.c.l.b16 %v623
        %v790 = vunpack.c.h.b16 %v623
        %v791 = vunpack.c.l.b16 %v624
        %v792 = vunpack.c.h.b16 %v624
        %v793 = vunpack.c.l.b16 %v625
        %v794 = vunpack.c.h.b16 %v625
        %v795 = vunpack.c.l.b16 %v626
        %v796 = vunpack.c.h.b16 %v626
        %v797 = vunpack.c.l.b16 %v627
        %v798 = vunpack.c.h.b16 %v627
        %v799 = vunpack.c.l.b16 %v628
        %v800 = vunpack.c.h.b16 %v628
        %v801 = vunpack.c.l.b16 %v629
        %v802 = vunpack.c.h.b16 %v629
        %v803 = vunpack.c.l.b16 %v630
        %v804 = vunpack.c.h.b16 %v630
        %v805 = vunpack.c.l.b16 %v631
        %v806 = vunpack.c.h.b16 %v631
        %v807 = vunpack.c.l.b16 %v632
        %v808 = vunpack.c.h.b16 %v632
        %v809 = vunpack.c.l.b16 %v633
        %v810 = vunpack.c.h.b16 %v633
        %v811 = vunpack.c.l.b16 %v634
        %v812 = vunpack.c.h.b16 %v634
        %v813 = vunpack.c.l.b16 %v635
        %v814 = vunpack.c.h.b16 %v635
        %v815 = vunpack.c.l.b16 %v636
        %v816 = vunpack.c.h.b16 %v636
        %v817 = vunpack.c.l.b16 %v637
        %v818 = vunpack.c.h.b16 %v637
        %v819 = vunpack.c.l.b16 %v638
        %v820 = vunpack.c.h.b16 %v638
        %v821 = vunpack.c.l.b16 %v639
        %v822 = vunpack.c.h.b16 %v639
        %v823 = vunpack.c.l.b16 %v640
        %v824 = vunpack.c.h.b16 %v640
        %v825 = vunpack.c.l.b16 %v641
        %v826 = vunpack.c.h.b16 %v641
        %v827 = vunpack.c.l.b16 %v642
        %v828 = vunpack.c.h.b16 %v642
        %v829 = vunpack.c.l.b16 %v643
        %v830 = vunpack.c.h.b16 %v643
        %v831 = vunpack.c.l.b16 %v644
        %v832 = vunpack.c.h.b16 %v644
        %v833 = vunpack.c.l.b16 %v645
        %v834 = vunpack.c.h.b16 %v645
        %v835 = vunpack.c.l.b16 %v646
        %v836 = vunpack.c.h.b16 %v646
        %v837 = vunpack.c.l.b16 %v647
        %v838 = vunpack.c.h.b16 %v647
        %v839 = vunpack.c.l.b16 %v648
        %v840 = vunpack.c.h.b16 %v648
        %v841 = vunpack.c.l.b16 %v649
        %v842 = vunpack.c.h.b16 %v649
        %v843 = vunpack.c.l.b16 %v650
        %v844 = vunpack.c.h.b16 %v650
        %v845 = vunpack.c.l.b16 %v651
        %v846 = vunpack.c.h.b16 %v651
        %v847 = vunpack.c.l.b16 %v652
        %v848 = vunpack.c.h.b16 %v652
        %v849 = vunpack.c.l.b16 %v653
        %v850 = vunpack.c.h.b16 %v653
        %v851 = vunpack.c.l.b16 %v654
        %v852 = vunpack.c.h.b16 %v654
        %v853 = vunpack.c.l.b16 %v655
        %v854 = vunpack.c.h.b16 %v655
        %v855 = vunpack.c.l.b16 %v656
        %v856 = vunpack.c.h.b16 %v656
        %v857 = vunpack.c.l.b16 %v657
        %v858 = vunpack.c.h.b16 %v657
        %v859 = vunpack.c.l.b16 %v658
        %v860 = vunpack.c.h.b16 %v658
        %v861 = vunpack.c.l.b16 %v659
        %v862 = vunpack.c.h.b16 %v659
        %v863 = vunpack.c.l.b16 %v660
        %v864 = vunpack.c.h.b16 %v660
        %v865 = vunpack.c.l.b16 %v661
        %v866 = vunpack.c.h.b16 %v661
        %v867 = vunpack.c.l.b16 %v662
        %v868 = vunpack.c.h.b16 %v662
        %v869 = vunpack.c.l.b16 %v663
        %v870 = vunpack.c.h.b16 %v663
        %v871 = vunpack.c.l.b16 %v664
        %v872 = vunpack.c.h.b16 %v664
        %v873 = vunpack.c.l.b16 %v665
        %v874 = vunpack.c.h.b16 %v665
        %v875 = vunpack.c.l.b16 %v666
        %v876 = vunpack.c.h.b16 %v666
        %v877 = vpack.c.b16 %v757, %v749
        %v878 = vpack.c.b16 %v758, %v750
        %v879 = vpack.c.b16 %v759, %v751
        %v880 = vpack.c.b16 %v760, %v752
        %v881 = vpack.c.b16 %v761, %v753
        %v882 = vpack.c.b16 %v762, %v754
        %v883 = vpack.c.b16 %v763, %v755
        %v884 = vpack.c.b16 %v764, %v756
        %v885 = vpack.c.b16 %v773, %v765
        %v886 = vpack.c.b16 %v774, %v766
        %v887 = vpack.c.b16 %v775, %v767
        %v888 = vpack.c.b16 %v776, %v768
        %v889 = vpack.c.b16 %v777, %v769
        %v890 = vpack.c.b16 %v778, %v770
        %v891 = vpack.c.b16 %v779, %v771
        %v892 = vpack.c.b16 %v780, %v772
        %v893 = vpack.c.b16 %v789, %v781
        %v894 = vpack.c.b16 %v790, %v782
        %v895 = vpack.c.b16 %v791, %v783
        %v896 = vpack.c.b16 %v792, %v784
        %v897 = vpack.c.b16 %v793, %v785
        %v898 = vpack.c.b16 %v794, %v786
        %v899 = vpack.c.b16 %v795, %v787
        %v900 = vpack.c.b16 %v796, %v788
        %v901 = vpack.c.b16 %v805, %v797
        %v902 = vpack.c.b16 %v806, %v798
        %v903 = vpack.c.b16 %v807, %v799
        %v904 = vpack.c.b16 %v808, %v800
        %v905 = vpack.c.b16 %v809, %v801
        %v906 = vpack.c.b16 %v810, %v802
        %v907 = vpack.c.b16 %v811, %v803
        %v908 = vpack.c.b16 %v812, %v804
        %v909 = vpack.c.b16 %v821, %v813
        %v910 = vpack.c.b16 %v822, %v814
        %v911 = vpack.c.b16 %v823, %v815
        %v912 = vpack.c.b16 %v824, %v816
        %v913 = vpack.c.b16 %v825, %v817
        %v914 = vpack.c.b16 %v826, %v818
        %v915 = vpack.c.b16 %v827, %v819
        %v916 = vpack.c.b16 %v828, %v820
        %v917 = vpack.c.b16 %v837, %v829
        %v918 = vpack.c.b16 %v838, %v830
        %v919 = vpack.c.b16 %v839, %v831
        %v920 = vpack.c.b16 %v840, %v832
        %v921 = vpack.c.b16 %v841, %v833
        %v922 = vpack.c.b16 %v842, %v834
        %v923 = vpack.c.b16 %v843, %v835
        %v924 = vpack.c.b16 %v844, %v836
        %v925 = vpack.c.b16 %v853, %v845
        %v926 = vpack.c.b16 %v854, %v846
        %v927 = vpack.c.b16 %v855, %v847
        %v928 = vpack.c.b16 %v856, %v848
        %v929 = vpack.c.b16 %v857, %v849
        %v930 = vpack.c.b16 %v858, %v850
        %v931 = vpack.c.b16 %v859, %v851
        %v932 = vpack.c.b16 %v860, %v852
        %v933 = vpack.c.b16 %v869, %v861
        %v934 = vpack.c.b16 %v870, %v862
        %v935 = vpack.c.b16 %v871, %v863
        %v936 = vpack.c.b16 %v872, %v864
        %v937 = vpack.c.b16 %v873, %v865
        %v938 = vpack.c.b16 %v874, %v866
        %v939 = vpack.c.b16 %v875, %v867
        %v940 = vpack.c.b16 %v876, %v868
        %1005 = vmatpush.bf16.msra.mxu0 %v933
        %1006 = vmatpush.bf16.msra.mxu0 %v925
        %1007 = vmatpush.bf16.msra.mxu0 %v917
        %1008 = vmatpush.bf16.msra.mxu0 %v909
        %1009 = vmatpush.bf16.msra.mxu0 %v901
        %1010 = vmatpush.bf16.msra.mxu0 %v893
        %1011 = vmatpush.bf16.msra.mxu0 %v885
        %1012 = vmatpush.bf16.msra.mxu0 %v877
        %1013 = vmatmul.bf16.gmra.mxu0 %v595
        %v1014 = vpop.f32.mrf.mxu0
        %v1015 = vadd.f32 %v669, %v1014
        %v1016 = vpop.f32.mrf.mxu0
        %v1017 = vadd.f32 %v669, %v1016
        %1018 = vmatmul.bf16.gmra.mxu0 %v596
        %v1019 = vpop.f32.mrf.mxu0
        %v1020 = vadd.f32 %v669, %v1019
        %v1021 = vpop.f32.mrf.mxu0
        %v1022 = vadd.f32 %v669, %v1021
        %1023 = vmatmul.bf16.gmra.mxu0 %v597
        %v1024 = vpop.f32.mrf.mxu0
        %v1025 = vadd.f32 %v669, %v1024
        %v1026 = vpop.f32.mrf.mxu0
        %v1027 = vadd.f32 %v669, %v1026
        %1028 = vmatmul.bf16.gmra.mxu0 %v598
        %v1029 = vpop.f32.mrf.mxu0
        %v1030 = vadd.f32 %v669, %v1029
        %v1031 = vpop.f32.mrf.mxu0
        %v1032 = vadd.f32 %v669, %v1031
        %1033 = vmatmul.bf16.gmra.mxu0 %v599
        %v1034 = vpop.f32.mrf.mxu0
        %v1035 = vadd.f32 %v669, %v1034
        %v1036 = vpop.f32.mrf.mxu0
        %v1037 = vadd.f32 %v669, %v1036
        %1038 = vmatmul.bf16.gmra.mxu0 %v600
        %v1039 = vpop.f32.mrf.mxu0
        %v1040 = vadd.f32 %v669, %v1039
        %v1041 = vpop.f32.mrf.mxu0
        %v1042 = vadd.f32 %v669, %v1041
        %1043 = vmatmul.bf16.gmra.mxu0 %v601
        %v1044 = vpop.f32.mrf.mxu0
        %v1045 = vadd.f32 %v669, %v1044
        %v1046 = vpop.f32.mrf.mxu0
        %v1047 = vadd.f32 %v669, %v1046
        %1048 = vmatmul.bf16.gmra.mxu0 %v602
        %v1049 = vpop.f32.mrf.mxu0
        %v1050 = vadd.f32 %v669, %v1049
        %v1051 = vpop.f32.mrf.mxu0
        %v1052 = vadd.f32 %v669, %v1051
        %1053 = vdwg.mxu0
        %1054 = vmatpush.bf16.msra.mxu0 %v934
        %1055 = vmatpush.bf16.msra.mxu0 %v926
        %1056 = vmatpush.bf16.msra.mxu0 %v918
        %1057 = vmatpush.bf16.msra.mxu0 %v910
        %1058 = vmatpush.bf16.msra.mxu0 %v902
        %1059 = vmatpush.bf16.msra.mxu0 %v894
        %1060 = vmatpush.bf16.msra.mxu0 %v886
        %1061 = vmatpush.bf16.msra.mxu0 %v878
        %1062 = vmatmul.bf16.gmra.mxu0 %v595
        %v1063 = vpop.f32.mrf.mxu0
        %v1064 = vadd.f32 %v670, %v1063
        %v1065 = vpop.f32.mrf.mxu0
        %v1066 = vadd.f32 %v670, %v1065
        %1067 = vmatmul.bf16.gmra.mxu0 %v596
        %v1068 = vpop.f32.mrf.mxu0
        %v1069 = vadd.f32 %v670, %v1068
        %v1070 = vpop.f32.mrf.mxu0
        %v1071 = vadd.f32 %v670, %v1070
        %1072 = vmatmul.bf16.gmra.mxu0 %v597
        %v1073 = vpop.f32.mrf.mxu0
        %v1074 = vadd.f32 %v670, %v1073
        %v1075 = vpop.f32.mrf.mxu0
        %v1076 = vadd.f32 %v670, %v1075
        %1077 = vmatmul.bf16.gmra.mxu0 %v598
        %v1078 = vpop.f32.mrf.mxu0
        %v1079 = vadd.f32 %v670, %v1078
        %v1080 = vpop.f32.mrf.mxu0
        %v1081 = vadd.f32 %v670, %v1080
        %1082 = vmatmul.bf16.gmra.mxu0 %v599
        %v1083 = vpop.f32.mrf.mxu0
        %v1084 = vadd.f32 %v670, %v1083
        %v1085 = vpop.f32.mrf.mxu0
        %v1086 = vadd.f32 %v670, %v1085
        %1087 = vmatmul.bf16.gmra.mxu0 %v600
        %v1088 = vpop.f32.mrf.mxu0
        %v1089 = vadd.f32 %v670, %v1088
        %v1090 = vpop.f32.mrf.mxu0
        %v1091 = vadd.f32 %v670, %v1090
        %1092 = vmatmul.bf16.gmra.mxu0 %v601
        %v1093 = vpop.f32.mrf.mxu0
        %v1094 = vadd.f32 %v670, %v1093
        %v1095 = vpop.f32.mrf.mxu0
        %v1096 = vadd.f32 %v670, %v1095
        %1097 = vmatmul.bf16.gmra.mxu0 %v602
        %v1098 = vpop.f32.mrf.mxu0
        %v1099 = vadd.f32 %v670, %v1098
        %v1100 = vpop.f32.mrf.mxu0
        %v1101 = vadd.f32 %v670, %v1100
        %1102 = vdwg.mxu0
        %1103 = vmatpush.bf16.msra.mxu0 %v935
        %1104 = vmatpush.bf16.msra.mxu0 %v927
        %1105 = vmatpush.bf16.msra.mxu0 %v919
        %1106 = vmatpush.bf16.msra.mxu0 %v911
        %1107 = vmatpush.bf16.msra.mxu0 %v903
        %1108 = vmatpush.bf16.msra.mxu0 %v895
        %1109 = vmatpush.bf16.msra.mxu0 %v887
        %1110 = vmatpush.bf16.msra.mxu0 %v879
        %1111 = vmatmul.bf16.gmra.mxu0 %v595
        %v1112 = vpop.f32.mrf.mxu0
        %v1113 = vadd.f32 %v671, %v1112
        %v1114 = vpop.f32.mrf.mxu0
        %v1115 = vadd.f32 %v671, %v1114
        %1116 = vmatmul.bf16.gmra.mxu0 %v596
        %v1117 = vpop.f32.mrf.mxu0
        %v1118 = vadd.f32 %v671, %v1117
        %v1119 = vpop.f32.mrf.mxu0
        %v1120 = vadd.f32 %v671, %v1119
        %1121 = vmatmul.bf16.gmra.mxu0 %v597
        %v1122 = vpop.f32.mrf.mxu0
        %v1123 = vadd.f32 %v671, %v1122
        %v1124 = vpop.f32.mrf.mxu0
        %v1125 = vadd.f32 %v671, %v1124
        %1126 = vmatmul.bf16.gmra.mxu0 %v598
        %v1127 = vpop.f32.mrf.mxu0
        %v1128 = vadd.f32 %v671, %v1127
        %v1129 = vpop.f32.mrf.mxu0
        %v1130 = vadd.f32 %v671, %v1129
        %1131 = vmatmul.bf16.gmra.mxu0 %v599
        %v1132 = vpop.f32.mrf.mxu0
        %v1133 = vadd.f32 %v671, %v1132
        %v1134 = vpop.f32.mrf.mxu0
        %v1135 = vadd.f32 %v671, %v1134
        %1136 = vmatmul.bf16.gmra.mxu0 %v600
        %v1137 = vpop.f32.mrf.mxu0
        %v1138 = vadd.f32 %v671, %v1137
        %v1139 = vpop.f32.mrf.mxu0
        %v1140 = vadd.f32 %v671, %v1139
        %1141 = vmatmul.bf16.gmra.mxu0 %v601
        %v1142 = vpop.f32.mrf.mxu0
        %v1143 = vadd.f32 %v671, %v1142
        %v1144 = vpop.f32.mrf.mxu0
        %v1145 = vadd.f32 %v671, %v1144
        %1146 = vmatmul.bf16.gmra.mxu0 %v602
        %v1147 = vpop.f32.mrf.mxu0
        %v1148 = vadd.f32 %v671, %v1147
        %v1149 = vpop.f32.mrf.mxu0
        %v1150 = vadd.f32 %v671, %v1149
        %1151 = vdwg.mxu0
        %1152 = vmatpush.bf16.msra.mxu0 %v936
        %1153 = vmatpush.bf16.msra.mxu0 %v928
        %1154 = vmatpush.bf16.msra.mxu0 %v920
        %1155 = vmatpush.bf16.msra.mxu0 %v912
        %1156 = vmatpush.bf16.msra.mxu0 %v904
        %1157 = vmatpush.bf16.msra.mxu0 %v896
        %1158 = vmatpush.bf16.msra.mxu0 %v888
        %1159 = vmatpush.bf16.msra.mxu0 %v880
        %1160 = vmatmul.bf16.gmra.mxu0 %v595
        %v1161 = vpop.f32.mrf.mxu0
        %v1162 = vadd.f32 %v672, %v1161
        %v1163 = vpop.f32.mrf.mxu0
        %v1164 = vadd.f32 %v672, %v1163
        %1165 = vmatmul.bf16.gmra.mxu0 %v596
        %v1166 = vpop.f32.mrf.mxu0
        %v1167 = vadd.f32 %v672, %v1166
        %v1168 = vpop.f32.mrf.mxu0
        %v1169 = vadd.f32 %v672, %v1168
        %1170 = vmatmul.bf16.gmra.mxu0 %v597
        %v1171 = vpop.f32.mrf.mxu0
        %v1172 = vadd.f32 %v672, %v1171
        %v1173 = vpop.f32.mrf.mxu0
        %v1174 = vadd.f32 %v672, %v1173
        %1175 = vmatmul.bf16.gmra.mxu0 %v598
        %v1176 = vpop.f32.mrf.mxu0
        %v1177 = vadd.f32 %v672, %v1176
        %v1178 = vpop.f32.mrf.mxu0
        %v1179 = vadd.f32 %v672, %v1178
        %1180 = vmatmul.bf16.gmra.mxu0 %v599
        %v1181 = vpop.f32.mrf.mxu0
        %v1182 = vadd.f32 %v672, %v1181
        %v1183 = vpop.f32.mrf.mxu0
        %v1184 = vadd.f32 %v672, %v1183
        %1185 = vmatmul.bf16.gmra.mxu0 %v600
        %v1186 = vpop.f32.mrf.mxu0
        %v1187 = vadd.f32 %v672, %v1186
        %v1188 = vpop.f32.mrf.mxu0
        %v1189 = vadd.f32 %v672, %v1188
        %1190 = vmatmul.bf16.gmra.mxu0 %v601
        %v1191 = vpop.f32.mrf.mxu0
        %v1192 = vadd.f32 %v672, %v1191
        %v1193 = vpop.f32.mrf.mxu0
        %v1194 = vadd.f32 %v672, %v1193
        %1195 = vmatmul.bf16.gmra.mxu0 %v602
        %v1196 = vpop.f32.mrf.mxu0
        %v1197 = vadd.f32 %v672, %v1196
        %v1198 = vpop.f32.mrf.mxu0
        %v1199 = vadd.f32 %v672, %v1198
        %1200 = vdwg.mxu0
        %1201 = vmatpush.bf16.msra.mxu0 %v937
        %1202 = vmatpush.bf16.msra.mxu0 %v929
        %1203 = vmatpush.bf16.msra.mxu0 %v921
        %1204 = vmatpush.bf16.msra.mxu0 %v913
        %1205 = vmatpush.bf16.msra.mxu0 %v905
        %1206 = vmatpush.bf16.msra.mxu0 %v897
        %1207 = vmatpush.bf16.msra.mxu0 %v889
        %1208 = vmatpush.bf16.msra.mxu0 %v881
        %1209 = vmatmul.bf16.gmra.mxu0 %v595
        %v1210 = vpop.f32.mrf.mxu0
        %v1211 = vadd.f32 %v673, %v1210
        %v1212 = vpop.f32.mrf.mxu0
        %v1213 = vadd.f32 %v673, %v1212
        %1214 = vmatmul.bf16.gmra.mxu0 %v596
        %v1215 = vpop.f32.mrf.mxu0
        %v1216 = vadd.f32 %v673, %v1215
        %v1217 = vpop.f32.mrf.mxu0
        %v1218 = vadd.f32 %v673, %v1217
        %1219 = vmatmul.bf16.gmra.mxu0 %v597
        %v1220 = vpop.f32.mrf.mxu0
        %v1221 = vadd.f32 %v673, %v1220
        %v1222 = vpop.f32.mrf.mxu0
        %v1223 = vadd.f32 %v673, %v1222
        %1224 = vmatmul.bf16.gmra.mxu0 %v598
        %v1225 = vpop.f32.mrf.mxu0
        %v1226 = vadd.f32 %v673, %v1225
        %v1227 = vpop.f32.mrf.mxu0
        %v1228 = vadd.f32 %v673, %v1227
        %1229 = vmatmul.bf16.gmra.mxu0 %v599
        %v1230 = vpop.f32.mrf.mxu0
        %v1231 = vadd.f32 %v673, %v1230
        %v1232 = vpop.f32.mrf.mxu0
        %v1233 = vadd.f32 %v673, %v1232
        %1234 = vmatmul.bf16.gmra.mxu0 %v600
        %v1235 = vpop.f32.mrf.mxu0
        %v1236 = vadd.f32 %v673, %v1235
        %v1237 = vpop.f32.mrf.mxu0
        %v1238 = vadd.f32 %v673, %v1237
        %1239 = vmatmul.bf16.gmra.mxu0 %v601
        %v1240 = vpop.f32.mrf.mxu0
        %v1241 = vadd.f32 %v673, %v1240
        %v1242 = vpop.f32.mrf.mxu0
        %v1243 = vadd.f32 %v673, %v1242
        %1244 = vmatmul.bf16.gmra.mxu0 %v602
        %v1245 = vpop.f32.mrf.mxu0
        %v1246 = vadd.f32 %v673, %v1245
        %v1247 = vpop.f32.mrf.mxu0
        %v1248 = vadd.f32 %v673, %v1247
        %1249 = vdwg.mxu0
        %1250 = vmatpush.bf16.msra.mxu0 %v938
        %1251 = vmatpush.bf16.msra.mxu0 %v930
        %1252 = vmatpush.bf16.msra.mxu0 %v922
        %1253 = vmatpush.bf16.msra.mxu0 %v914
        %1254 = vmatpush.bf16.msra.mxu0 %v906
        %1255 = vmatpush.bf16.msra.mxu0 %v898
        %1256 = vmatpush.bf16.msra.mxu0 %v890
        %1257 = vmatpush.bf16.msra.mxu0 %v882
        %1258 = vmatmul.bf16.gmra.mxu0 %v595
        %v1259 = vpop.f32.mrf.mxu0
        %v1260 = vadd.f32 %v674, %v1259
        %v1261 = vpop.f32.mrf.mxu0
        %v1262 = vadd.f32 %v674, %v1261
        %1263 = vmatmul.bf16.gmra.mxu0 %v596
        %v1264 = vpop.f32.mrf.mxu0
        %v1265 = vadd.f32 %v674, %v1264
        %v1266 = vpop.f32.mrf.mxu0
        %v1267 = vadd.f32 %v674, %v1266
        %1268 = vmatmul.bf16.gmra.mxu0 %v597
        %v1269 = vpop.f32.mrf.mxu0
        %v1270 = vadd.f32 %v674, %v1269
        %v1271 = vpop.f32.mrf.mxu0
        %v1272 = vadd.f32 %v674, %v1271
        %1273 = vmatmul.bf16.gmra.mxu0 %v598
        %v1274 = vpop.f32.mrf.mxu0
        %v1275 = vadd.f32 %v674, %v1274
        %v1276 = vpop.f32.mrf.mxu0
        %v1277 = vadd.f32 %v674, %v1276
        %1278 = vmatmul.bf16.gmra.mxu0 %v599
        %v1279 = vpop.f32.mrf.mxu0
        %v1280 = vadd.f32 %v674, %v1279
        %v1281 = vpop.f32.mrf.mxu0
        %v1282 = vadd.f32 %v674, %v1281
        %1283 = vmatmul.bf16.gmra.mxu0 %v600
        %v1284 = vpop.f32.mrf.mxu0
        %v1285 = vadd.f32 %v674, %v1284
        %v1286 = vpop.f32.mrf.mxu0
        %v1287 = vadd.f32 %v674, %v1286
        %1288 = vmatmul.bf16.gmra.mxu0 %v601
        %v1289 = vpop.f32.mrf.mxu0
        %v1290 = vadd.f32 %v674, %v1289
        %v1291 = vpop.f32.mrf.mxu0
        %v1292 = vadd.f32 %v674, %v1291
        %1293 = vmatmul.bf16.gmra.mxu0 %v602
        %v1294 = vpop.f32.mrf.mxu0
        %v1295 = vadd.f32 %v674, %v1294
        %v1296 = vpop.f32.mrf.mxu0
        %v1297 = vadd.f32 %v674, %v1296
        %1298 = vdwg.mxu0
        %1299 = vmatpush.bf16.msra.mxu0 %v939
        %1300 = vmatpush.bf16.msra.mxu0 %v931
        %1301 = vmatpush.bf16.msra.mxu0 %v923
        %1302 = vmatpush.bf16.msra.mxu0 %v915
        %1303 = vmatpush.bf16.msra.mxu0 %v907
        %1304 = vmatpush.bf16.msra.mxu0 %v899
        %1305 = vmatpush.bf16.msra.mxu0 %v891
        %1306 = vmatpush.bf16.msra.mxu0 %v883
        %1307 = vmatmul.bf16.gmra.mxu0 %v595
        %v1308 = vpop.f32.mrf.mxu0
        %v1309 = vadd.f32 %v675, %v1308
        %v1310 = vpop.f32.mrf.mxu0
        %v1311 = vadd.f32 %v675, %v1310
        %1312 = vmatmul.bf16.gmra.mxu0 %v596
        %v1313 = vpop.f32.mrf.mxu0
        %v1314 = vadd.f32 %v675, %v1313
        %v1315 = vpop.f32.mrf.mxu0
        %v1316 = vadd.f32 %v675, %v1315
        %1317 = vmatmul.bf16.gmra.mxu0 %v597
        %v1318 = vpop.f32.mrf.mxu0
        %v1319 = vadd.f32 %v675, %v1318
        %v1320 = vpop.f32.mrf.mxu0
        %v1321 = vadd.f32 %v675, %v1320
        %1322 = vmatmul.bf16.gmra.mxu0 %v598
        %v1323 = vpop.f32.mrf.mxu0
        %v1324 = vadd.f32 %v675, %v1323
        %v1325 = vpop.f32.mrf.mxu0
        %v1326 = vadd.f32 %v675, %v1325
        %1327 = vmatmul.bf16.gmra.mxu0 %v599
        %v1328 = vpop.f32.mrf.mxu0
        %v1329 = vadd.f32 %v675, %v1328
        %v1330 = vpop.f32.mrf.mxu0
        %v1331 = vadd.f32 %v675, %v1330
        %1332 = vmatmul.bf16.gmra.mxu0 %v600
        %v1333 = vpop.f32.mrf.mxu0
        %v1334 = vadd.f32 %v675, %v1333
        %v1335 = vpop.f32.mrf.mxu0
        %v1336 = vadd.f32 %v675, %v1335
        %1337 = vmatmul.bf16.gmra.mxu0 %v601
        %v1338 = vpop.f32.mrf.mxu0
        %v1339 = vadd.f32 %v675, %v1338
        %v1340 = vpop.f32.mrf.mxu0
        %v1341 = vadd.f32 %v675, %v1340
        %1342 = vmatmul.bf16.gmra.mxu0 %v602
        %v1343 = vpop.f32.mrf.mxu0
        %v1344 = vadd.f32 %v675, %v1343
        %v1345 = vpop.f32.mrf.mxu0
        %v1346 = vadd.f32 %v675, %v1345
        %1347 = vdwg.mxu0
        %1348 = vmatpush.bf16.msra.mxu0 %v940
        %1349 = vmatpush.bf16.msra.mxu0 %v932
        %1350 = vmatpush.bf16.msra.mxu0 %v924
        %1351 = vmatpush.bf16.msra.mxu0 %v916
        %1352 = vmatpush.bf16.msra.mxu0 %v908
        %1353 = vmatpush.bf16.msra.mxu0 %v900
        %1354 = vmatpush.bf16.msra.mxu0 %v892
        %1355 = vmatpush.bf16.msra.mxu0 %v884
        %1356 = vmatmul.bf16.gmra.mxu0 %v595
        %v1357 = vpop.f32.mrf.mxu0
        %v1358 = vadd.f32 %v676, %v1357
        %v1359 = vpop.f32.mrf.mxu0
        %v1360 = vadd.f32 %v676, %v1359
        %1361 = vmatmul.bf16.gmra.mxu0 %v596
        %v1362 = vpop.f32.mrf.mxu0
        %v1363 = vadd.f32 %v676, %v1362
        %v1364 = vpop.f32.mrf.mxu0
        %v1365 = vadd.f32 %v676, %v1364
        %1366 = vmatmul.bf16.gmra.mxu0 %v597
        %v1367 = vpop.f32.mrf.mxu0
        %v1368 = vadd.f32 %v676, %v1367
        %v1369 = vpop.f32.mrf.mxu0
        %v1370 = vadd.f32 %v676, %v1369
        %1371 = vmatmul.bf16.gmra.mxu0 %v598
        %v1372 = vpop.f32.mrf.mxu0
        %v1373 = vadd.f32 %v676, %v1372
        %v1374 = vpop.f32.mrf.mxu0
        %v1375 = vadd.f32 %v676, %v1374
        %1376 = vmatmul.bf16.gmra.mxu0 %v599
        %v1377 = vpop.f32.mrf.mxu0
        %v1378 = vadd.f32 %v676, %v1377
        %v1379 = vpop.f32.mrf.mxu0
        %v1380 = vadd.f32 %v676, %v1379
        %1381 = vmatmul.bf16.gmra.mxu0 %v600
        %v1382 = vpop.f32.mrf.mxu0
        %v1383 = vadd.f32 %v676, %v1382
        %v1384 = vpop.f32.mrf.mxu0
        %v1385 = vadd.f32 %v676, %v1384
        %1386 = vmatmul.bf16.gmra.mxu0 %v601
        %v1387 = vpop.f32.mrf.mxu0
        %v1388 = vadd.f32 %v676, %v1387
        %v1389 = vpop.f32.mrf.mxu0
        %v1390 = vadd.f32 %v676, %v1389
        %1391 = vmatmul.bf16.gmra.mxu0 %v602
        %v1392 = vpop.f32.mrf.mxu0
        %v1393 = vadd.f32 %v676, %v1392
        %v1394 = vpop.f32.mrf.mxu0
        %v1395 = vadd.f32 %v676, %v1394
        %1396 = vdwg.mxu0
        %v1397 = vmax.f32 %v1015, 0.0
        %v1398 = vmax.f32 %v1064, 0.0
        %v1399 = vmax.f32 %v1113, 0.0
        %v1400 = vmax.f32 %v1162, 0.0
        %v1401 = vmax.f32 %v1211, 0.0
        %v1402 = vmax.f32 %v1260, 0.0
        %v1403 = vmax.f32 %v1309, 0.0
        %v1404 = vmax.f32 %v1358, 0.0
        %v1405 = vmax.f32 %v1017, 0.0
        %v1406 = vmax.f32 %v1066, 0.0
        %v1407 = vmax.f32 %v1115, 0.0
        %v1408 = vmax.f32 %v1164, 0.0
        %v1409 = vmax.f32 %v1213, 0.0
        %v1410 = vmax.f32 %v1262, 0.0
        %v1411 = vmax.f32 %v1311, 0.0
        %v1412 = vmax.f32 %v1360, 0.0
        %v1413 = vmax.f32 %v1020, 0.0
        %v1414 = vmax.f32 %v1069, 0.0
        %v1415 = vmax.f32 %v1118, 0.0
        %v1416 = vmax.f32 %v1167, 0.0
        %v1417 = vmax.f32 %v1216, 0.0
        %v1418 = vmax.f32 %v1265, 0.0
        %v1419 = vmax.f32 %v1314, 0.0
        %v1420 = vmax.f32 %v1363, 0.0
        %v1421 = vmax.f32 %v1022, 0.0
        %v1422 = vmax.f32 %v1071, 0.0
        %v1423 = vmax.f32 %v1120, 0.0
        %v1424 = vmax.f32 %v1169, 0.0
        %v1425 = vmax.f32 %v1218, 0.0
        %v1426 = vmax.f32 %v1267, 0.0
        %v1427 = vmax.f32 %v1316, 0.0
        %v1428 = vmax.f32 %v1365, 0.0
        %v1429 = vmax.f32 %v1025, 0.0
        %v1430 = vmax.f32 %v1074, 0.0
        %v1431 = vmax.f32 %v1123, 0.0
        %v1432 = vmax.f32 %v1172, 0.0
        %v1433 = vmax.f32 %v1221, 0.0
        %v1434 = vmax.f32 %v1270, 0.0
        %v1435 = vmax.f32 %v1319, 0.0
        %v1436 = vmax.f32 %v1368, 0.0
        %v1437 = vmax.f32 %v1027, 0.0
        %v1438 = vmax.f32 %v1076, 0.0
        %v1439 = vmax.f32 %v1125, 0.0
        %v1440 = vmax.f32 %v1174, 0.0
        %v1441 = vmax.f32 %v1223, 0.0
        %v1442 = vmax.f32 %v1272, 0.0
        %v1443 = vmax.f32 %v1321, 0.0
        %v1444 = vmax.f32 %v1370, 0.0
        %v1445 = vmax.f32 %v1030, 0.0
        %v1446 = vmax.f32 %v1079, 0.0
        %v1447 = vmax.f32 %v1128, 0.0
        %v1448 = vmax.f32 %v1177, 0.0
        %v1449 = vmax.f32 %v1226, 0.0
        %v1450 = vmax.f32 %v1275, 0.0
        %v1451 = vmax.f32 %v1324, 0.0
        %v1452 = vmax.f32 %v1373, 0.0
        %v1453 = vmax.f32 %v1032, 0.0
        %v1454 = vmax.f32 %v1081, 0.0
        %v1455 = vmax.f32 %v1130, 0.0
        %v1456 = vmax.f32 %v1179, 0.0
        %v1457 = vmax.f32 %v1228, 0.0
        %v1458 = vmax.f32 %v1277, 0.0
        %v1459 = vmax.f32 %v1326, 0.0
        %v1460 = vmax.f32 %v1375, 0.0
        %v1461 = vmax.f32 %v1035, 0.0
        %v1462 = vmax.f32 %v1084, 0.0
        %v1463 = vmax.f32 %v1133, 0.0
        %v1464 = vmax.f32 %v1182, 0.0
        %v1465 = vmax.f32 %v1231, 0.0
        %v1466 = vmax.f32 %v1280, 0.0
        %v1467 = vmax.f32 %v1329, 0.0
        %v1468 = vmax.f32 %v1378, 0.0
        %v1469 = vmax.f32 %v1037, 0.0
        %v1470 = vmax.f32 %v1086, 0.0
        %v1471 = vmax.f32 %v1135, 0.0
        %v1472 = vmax.f32 %v1184, 0.0
        %v1473 = vmax.f32 %v1233, 0.0
        %v1474 = vmax.f32 %v1282, 0.0
        %v1475 = vmax.f32 %v1331, 0.0
        %v1476 = vmax.f32 %v1380, 0.0
        %v1477 = vmax.f32 %v1040, 0.0
        %v1478 = vmax.f32 %v1089, 0.0
        %v1479 = vmax.f32 %v1138, 0.0
        %v1480 = vmax.f32 %v1187, 0.0
        %v1481 = vmax.f32 %v1236, 0.0
        %v1482 = vmax.f32 %v1285, 0.0
        %v1483 = vmax.f32 %v1334, 0.0
        %v1484 = vmax.f32 %v1383, 0.0
        %v1485 = vmax.f32 %v1042, 0.0
        %v1486 = vmax.f32 %v1091, 0.0
        %v1487 = vmax.f32 %v1140, 0.0
        %v1488 = vmax.f32 %v1189, 0.0
        %v1489 = vmax.f32 %v1238, 0.0
        %v1490 = vmax.f32 %v1287, 0.0
        %v1491 = vmax.f32 %v1336, 0.0
        %v1492 = vmax.f32 %v1385, 0.0
        %v1493 = vmax.f32 %v1045, 0.0
        %v1494 = vmax.f32 %v1094, 0.0
        %v1495 = vmax.f32 %v1143, 0.0
        %v1496 = vmax.f32 %v1192, 0.0
        %v1497 = vmax.f32 %v1241, 0.0
        %v1498 = vmax.f32 %v1290, 0.0
        %v1499 = vmax.f32 %v1339, 0.0
        %v1500 = vmax.f32 %v1388, 0.0
        %v1501 = vmax.f32 %v1047, 0.0
        %v1502 = vmax.f32 %v1096, 0.0
        %v1503 = vmax.f32 %v1145, 0.0
        %v1504 = vmax.f32 %v1194, 0.0
        %v1505 = vmax.f32 %v1243, 0.0
        %v1506 = vmax.f32 %v1292, 0.0
        %v1507 = vmax.f32 %v1341, 0.0
        %v1508 = vmax.f32 %v1390, 0.0
        %v1509 = vmax.f32 %v1050, 0.0
        %v1510 = vmax.f32 %v1099, 0.0
        %v1511 = vmax.f32 %v1148, 0.0
        %v1512 = vmax.f32 %v1197, 0.0
        %v1513 = vmax.f32 %v1246, 0.0
        %v1514 = vmax.f32 %v1295, 0.0
        %v1515 = vmax.f32 %v1344, 0.0
        %v1516 = vmax.f32 %v1393, 0.0
        %v1517 = vmax.f32 %v1052, 0.0
        %v1518 = vmax.f32 %v1101, 0.0
        %v1519 = vmax.f32 %v1150, 0.0
        %v1520 = vmax.f32 %v1199, 0.0
        %v1521 = vmax.f32 %v1248, 0.0
        %v1522 = vmax.f32 %v1297, 0.0
        %v1523 = vmax.f32 %v1346, 0.0
        %v1524 = vmax.f32 %v1395, 0.0
        %v1525 = vmax.f32 %v1397, %v1405
        %v1526 = vmax.f32 %v1525, %v1413
        %v1527 = vmax.f32 %v1526, %v1421
        %v1528 = vmax.f32 %v1527, %v1429
        %v1529 = vmax.f32 %v1528, %v1437
        %v1530 = vmax.f32 %v1529, %v1445
        %v1531 = vmax.f32 %v1530, %v1453
        %v1532 = vmax.f32 %v1531, %v1461
        %v1533 = vmax.f32 %v1532, %v1469
        %v1534 = vmax.f32 %v1533, %v1477
        %v1535 = vmax.f32 %v1534, %v1485
        %v1536 = vmax.f32 %v1535, %v1493
        %v1537 = vmax.f32 %v1536, %v1501
        %v1538 = vmax.f32 %v1537, %v1509
        %v1539 = vmax.f32 %v1538, %v1517
        %v1540 = vmax.f32 %v1398, %v1406
        %v1541 = vmax.f32 %v1540, %v1414
        %v1542 = vmax.f32 %v1541, %v1422
        %v1543 = vmax.f32 %v1542, %v1430
        %v1544 = vmax.f32 %v1543, %v1438
        %v1545 = vmax.f32 %v1544, %v1446
        %v1546 = vmax.f32 %v1545, %v1454
        %v1547 = vmax.f32 %v1546, %v1462
        %v1548 = vmax.f32 %v1547, %v1470
        %v1549 = vmax.f32 %v1548, %v1478
        %v1550 = vmax.f32 %v1549, %v1486
        %v1551 = vmax.f32 %v1550, %v1494
        %v1552 = vmax.f32 %v1551, %v1502
        %v1553 = vmax.f32 %v1552, %v1510
        %v1554 = vmax.f32 %v1553, %v1518
        %v1555 = vmax.f32 %v1399, %v1407
        %v1556 = vmax.f32 %v1555, %v1415
        %v1557 = vmax.f32 %v1556, %v1423
        %v1558 = vmax.f32 %v1557, %v1431
        %v1559 = vmax.f32 %v1558, %v1439
        %v1560 = vmax.f32 %v1559, %v1447
        %v1561 = vmax.f32 %v1560, %v1455
        %v1562 = vmax.f32 %v1561, %v1463
        %v1563 = vmax.f32 %v1562, %v1471
        %v1564 = vmax.f32 %v1563, %v1479
        %v1565 = vmax.f32 %v1564, %v1487
        %v1566 = vmax.f32 %v1565, %v1495
        %v1567 = vmax.f32 %v1566, %v1503
        %v1568 = vmax.f32 %v1567, %v1511
        %v1569 = vmax.f32 %v1568, %v1519
        %v1570 = vmax.f32 %v1400, %v1408
        %v1571 = vmax.f32 %v1570, %v1416
        %v1572 = vmax.f32 %v1571, %v1424
        %v1573 = vmax.f32 %v1572, %v1432
        %v1574 = vmax.f32 %v1573, %v1440
        %v1575 = vmax.f32 %v1574, %v1448
        %v1576 = vmax.f32 %v1575, %v1456
        %v1577 = vmax.f32 %v1576, %v1464
        %v1578 = vmax.f32 %v1577, %v1472
        %v1579 = vmax.f32 %v1578, %v1480
        %v1580 = vmax.f32 %v1579, %v1488
        %v1581 = vmax.f32 %v1580, %v1496
        %v1582 = vmax.f32 %v1581, %v1504
        %v1583 = vmax.f32 %v1582, %v1512
        %v1584 = vmax.f32 %v1583, %v1520
        %v1585 = vmax.f32 %v1401, %v1409
        %v1586 = vmax.f32 %v1585, %v1417
        %v1587 = vmax.f32 %v1586, %v1425
        %v1588 = vmax.f32 %v1587, %v1433
        %v1589 = vmax.f32 %v1588, %v1441
        %v1590 = vmax.f32 %v1589, %v1449
        %v1591 = vmax.f32 %v1590, %v1457
        %v1592 = vmax.f32 %v1591, %v1465
        %v1593 = vmax.f32 %v1592, %v1473
        %v1594 = vmax.f32 %v1593, %v1481
        %v1595 = vmax.f32 %v1594, %v1489
        %v1596 = vmax.f32 %v1595, %v1497
        %v1597 = vmax.f32 %v1596, %v1505
        %v1598 = vmax.f32 %v1597, %v1513
        %v1599 = vmax.f32 %v1598, %v1521
        %v1600 = vmax.f32 %v1402, %v1410
        %v1601 = vmax.f32 %v1600, %v1418
        %v1602 = vmax.f32 %v1601, %v1426
        %v1603 = vmax.f32 %v1602, %v1434
        %v1604 = vmax.f32 %v1603, %v1442
        %v1605 = vmax.f32 %v1604, %v1450
        %v1606 = vmax.f32 %v1605, %v1458
        %v1607 = vmax.f32 %v1606, %v1466
        %v1608 = vmax.f32 %v1607, %v1474
        %v1609 = vmax.f32 %v1608, %v1482
        %v1610 = vmax.f32 %v1609, %v1490
        %v1611 = vmax.f32 %v1610, %v1498
        %v1612 = vmax.f32 %v1611, %v1506
        %v1613 = vmax.f32 %v1612, %v1514
        %v1614 = vmax.f32 %v1613, %v1522
        %v1615 = vmax.f32 %v1403, %v1411
        %v1616 = vmax.f32 %v1615, %v1419
        %v1617 = vmax.f32 %v1616, %v1427
        %v1618 = vmax.f32 %v1617, %v1435
        %v1619 = vmax.f32 %v1618, %v1443
        %v1620 = vmax.f32 %v1619, %v1451
        %v1621 = vmax.f32 %v1620, %v1459
        %v1622 = vmax.f32 %v1621, %v1467
        %v1623 = vmax.f32 %v1622, %v1475
        %v1624 = vmax.f32 %v1623, %v1483
        %v1625 = vmax.f32 %v1624, %v1491
        %v1626 = vmax.f32 %v1625, %v1499
        %v1627 = vmax.f32 %v1626, %v1507
        %v1628 = vmax.f32 %v1627, %v1515
        %v1629 = vmax.f32 %v1628, %v1523
        %v1630 = vmax.f32 %v1404, %v1412
        %v1631 = vmax.f32 %v1630, %v1420
        %v1632 = vmax.f32 %v1631, %v1428
        %v1633 = vmax.f32 %v1632, %v1436
        %v1634 = vmax.f32 %v1633, %v1444
        %v1635 = vmax.f32 %v1634, %v1452
        %v1636 = vmax.f32 %v1635, %v1460
        %v1637 = vmax.f32 %v1636, %v1468
        %v1638 = vmax.f32 %v1637, %v1476
        %v1639 = vmax.f32 %v1638, %v1484
        %v1640 = vmax.f32 %v1639, %v1492
        %v1641 = vmax.f32 %v1640, %v1500
        %v1642 = vmax.f32 %v1641, %v1508
        %v1643 = vmax.f32 %v1642, %v1516
        %v1644 = vmax.f32 %v1643, %v1524
        %p1645 = scmp.eq.s32.totalorder %s26, 0
        // Predicated region
        $region49: #{tpu_custom_call.1} parent=47 // pred_check
          %p1646 = pneg %p1645
        $region50: #{tpu_custom_call.1} parent=47 // pred_check_branch
          %1648 = sbr.rel (%p1646) target = $region52
        $region51: #{tpu_custom_call.1} parent=47 // pred_region
          %1649 = vst [vmem:[#allocation2] sm:$0xff] -inf
          %1650 = vst [vmem:[#allocation2 + $0x8] sm:$0xff] -inf
          %1651 = vst [vmem:[#allocation2 + $0x10] sm:$0xff] -inf
          %1652 = vst [vmem:[#allocation2 + $0x18] sm:$0xff] -inf
          %1653 = vst [vmem:[#allocation2 + $0x20] sm:$0xff] -inf
          %1654 = vst [vmem:[#allocation2 + $0x28] sm:$0xff] -inf
          %1655 = vst [vmem:[#allocation2 + $0x30] sm:$0xff] -inf
          %1656 = vst [vmem:[#allocation2 + $0x38] sm:$0xff] -inf
        $region52: #{tpu_custom_call.1} parent=47 // pred_fallthru
          _
        %v1657 = vld [vmem:[#allocation2] sm:$0xff]
        %v1658 = vld [vmem:[#allocation2 + $0x8] sm:$0xff]
        %v1659 = vld [vmem:[#allocation2 + $0x10] sm:$0xff]
        %v1660 = vld [vmem:[#allocation2 + $0x18] sm:$0xff]
        %v1661 = vld [vmem:[#allocation2 + $0x20] sm:$0xff]
        %v1662 = vld [vmem:[#allocation2 + $0x28] sm:$0xff]
        %v1663 = vld [vmem:[#allocation2 + $0x30] sm:$0xff]
        %v1664 = vld [vmem:[#allocation2 + $0x38] sm:$0xff]
        %v1665 = vmax.f32 %v1657, %v1539
        %v1666 = vmax.f32 %v1658, %v1554
        %v1667 = vmax.f32 %v1659, %v1569
        %v1668 = vmax.f32 %v1660, %v1584
        %v1669 = vmax.f32 %v1661, %v1599
        %v1670 = vmax.f32 %v1662, %v1614
        %v1671 = vmax.f32 %v1663, %v1629
        %v1672 = vmax.f32 %v1664, %v1644
        %1673 = vst [vmem:[#allocation2] sm:$0xff] %v1665
        %1674 = vst [vmem:[#allocation2 + $0x8] sm:$0xff] %v1666
        %1675 = vst [vmem:[#allocation2 + $0x10] sm:$0xff] %v1667
        %1676 = vst [vmem:[#allocation2 + $0x18] sm:$0xff] %v1668
        %1677 = vst [vmem:[#allocation2 + $0x20] sm:$0xff] %v1669
        %1678 = vst [vmem:[#allocation2 + $0x28] sm:$0xff] %v1670
        %1679 = vst [vmem:[#allocation2 + $0x30] sm:$0xff] %v1671
        %1680 = vst [vmem:[#allocation2 + $0x38] sm:$0xff] %v1672
        %p1681 = scmp.eq.s32.totalorder %s26, 3
        // Predicated region
        $region53: #{tpu_custom_call.1} parent=47 // pred_check
          %p1682 = pneg %p1681
        $region54: #{tpu_custom_call.1} parent=47 // pred_check_branch
          %1684 = sbr.rel (%p1682) target = $region56
        $region55: #{tpu_custom_call.1} parent=47 // pred_region
          %v1685 = vld [vmem:[#allocation2] sm:$0xff]
          %v1686 = vld [vmem:[#allocation2 + $0x8] sm:$0xff]
          %v1687 = vld [vmem:[#allocation2 + $0x10] sm:$0xff]
          %v1688 = vld [vmem:[#allocation2 + $0x18] sm:$0xff]
          %v1689 = vld [vmem:[#allocation2 + $0x20] sm:$0xff]
          %v1690 = vld [vmem:[#allocation2 + $0x28] sm:$0xff]
          %v1691 = vld [vmem:[#allocation2 + $0x30] sm:$0xff]
          %v1692 = vld [vmem:[#allocation2 + $0x38] sm:$0xff]
          %v1693 = vrot.slane %v1685, 4
          %v1694 = vmax.f32 %v1685, %v1693
          %v1695 = vrot.slane %v1694, 2
          %v1696 = vmax.f32 %v1694, %v1695
          %v1697 = vrot.slane %v1696, 1
          %v1698 = vmax.f32 %v1696, %v1697
          %v1699 = vrot.slane %v1686, 4
          %v1700 = vmax.f32 %v1686, %v1699
          %v1701 = vrot.slane %v1700, 2
          %v1702 = vmax.f32 %v1700, %v1701
          %v1703 = vrot.slane %v1702, 1
          %v1704 = vmax.f32 %v1702, %v1703
          %v1705 = vrot.slane %v1687, 4
          %v1706 = vmax.f32 %v1687, %v1705
          %v1707 = vrot.slane %v1706, 2
          %v1708 = vmax.f32 %v1706, %v1707
          %v1709 = vrot.slane %v1708, 1
          %v1710 = vmax.f32 %v1708, %v1709
          %v1711 = vrot.slane %v1688, 4
          %v1712 = vmax.f32 %v1688, %v1711
          %v1713 = vrot.slane %v1712, 2
          %v1714 = vmax.f32 %v1712, %v1713
          %v1715 = vrot.slane %v1714, 1
          %v1716 = vmax.f32 %v1714, %v1715
          %v1717 = vrot.slane %v1689, 4
          %v1718 = vmax.f32 %v1689, %v1717
          %v1719 = vrot.slane %v1718, 2
          %v1720 = vmax.f32 %v1718, %v1719
          %v1721 = vrot.slane %v1720, 1
          %v1722 = vmax.f32 %v1720, %v1721
          %v1723 = vrot.slane %v1690, 4
          %v1724 = vmax.f32 %v1690, %v1723
          %v1725 = vrot.slane %v1724, 2
          %v1726 = vmax.f32 %v1724, %v1725
          %v1727 = vrot.slane %v1726, 1
          %v1728 = vmax.f32 %v1726, %v1727
          %v1729 = vrot.slane %v1691, 4
          %v1730 = vmax.f32 %v1691, %v1729
          %v1731 = vrot.slane %v1730, 2
          %v1732 = vmax.f32 %v1730, %v1731
          %v1733 = vrot.slane %v1732, 1
          %v1734 = vmax.f32 %v1732, %v1733
          %v1735 = vrot.slane %v1692, 4
          %v1736 = vmax.f32 %v1692, %v1735
          %v1737 = vrot.slane %v1736, 2
          %v1738 = vmax.f32 %v1736, %v1737
          %v1739 = vrot.slane %v1738, 1
          %v1740 = vmax.f32 %v1738, %v1739
          %v1749 = vrot.slane %v1704, 7
          %v1750 = vrot.slane %v1710, 6
          %v1751 = vrot.slane %v1716, 5
          %v1752 = vrot.slane %v1722, 4
          %v1753 = vrot.slane %v1728, 3
          %v1754 = vrot.slane %v1734, 2
          %v1755 = vrot.slane %v1740, 1
          %vm1756 = vcmask 1040384
          %v1757 = vsel %vm1756, %v1698, %v1749
          %vm1758 = vcmask 1042434
          %v1759 = vsel %vm1758, %v1750, %v1751
          %vm1760 = vcmask 1041408
          %v1761 = vsel %vm1760, %v1757, %v1759
          %vm1762 = vcmask 1044484
          %v1763 = vsel %vm1762, %v1752, %v1753
          %vm1764 = vcmask 1046534
          %v1765 = vsel %vm1764, %v1754, %v1755
          %vm1766 = vcmask 1045508
          %v1767 = vsel %vm1766, %v1763, %v1765
          %vm1768 = vcmask 1043456
          %v1769 = vsel %vm1768, %v1761, %v1767
          %1771 = vst [vmem:[%s294] sm:$0xff] %v1769
        $region56: #{tpu_custom_call.1} parent=47 // pred_fallthru
          _
        %s1772 = sand.u32 %s195, 1
        %s1773 = scalar_lea.sflag [#allocation4], %s1772
        %s1774 = sand.u32 %s195, 1
        %s1775 = smul.addr %s1774, 8
        %s1776 = scalar_lea.vmem [#allocation3], %s1775
        // Predicated region
        $region57: #{tpu_custom_call.1} parent=47 // pred_check
          %p1777 = pneg %p205
        $region58: #{tpu_custom_call.1} parent=47 // pred_check_branch
          %1779 = sbr.rel (%p1777) target = $region60
        $region59: #{tpu_custom_call.1} parent=47 // pred_region
          %1781 = vsyncadd %s1773, 0
          %s1782 = smul.addr %s25, 8
          %s1783 = scalar_lea.hbm %s7, %s1782
          %s1785 = sshll.u32 %s1776, 4
          %s1786 = int_to_ptr.vmem [resolvable:$true] %s1785
          %s1787 = sshll.u32 %s1783, 4
          %s1788 = int_to_ptr.hbm [resolvable:$true] %s1787
          %1790 = dma.vmem_to_hbm [thread:$0]  %s1786, 128, %s1788, %s1773
        $region60: #{tpu_custom_call.1} parent=47 // pred_fallthru
          _
      $region48: #{tpu_custom_call.1} parent=5 // pred_fallthru
        _
      %p1791 = scmp.le.s32.totalorder 2, %s16
      // Predicated region
      $region61: #{tpu_custom_call.1} parent=5 // pred_check
        %p1792 = pneg %p1791
      $region62: #{tpu_custom_call.1} parent=5 // pred_check_branch
        %1794 = sbr.rel (%p1792) target = $region64
      $region63: #{tpu_custom_call.1} parent=5 // pred_region
        %s1795 = ssub.s32 %s16, 2
        // Predicated region
        $region65: #{tpu_custom_call.1} parent=63 // pred_check
          %p1796 = pneg %p211
        $region66: #{tpu_custom_call.1} parent=63 // pred_check_branch
          %1798 = sbr.rel (%p1796) target = $region68
        $region67: #{tpu_custom_call.1} parent=63 // pred_region
          %s1799 = sand.u32 %s196, 1
          %s1800 = scalar_lea.sflag [#allocation4], %s1799
          %s1801 = sand.u32 %s196, 1
          %s1802 = smul.addr %s1801, 8
          %s1803 = scalar_lea.vmem [#allocation3], %s1802
          %1805 = dma.done %s1800, 128
        $region68: #{tpu_custom_call.1} parent=63 // pred_fallthru
          _
      $region64: #{tpu_custom_call.1} parent=5 // pred_fallthru
        _
    $region6: #{tpu_custom_call.1} parent=1 // loop_footer
      %s20 = sadd.s32 1, %s16
    $region7: #{tpu_custom_call.1} parent=1 // loop_footer_branch
      %15 = sbr.rel target = $region3
    $region8: #{tpu_custom_call.1} parent=1 // loop_exit
      _
    %1806 = vsyncpa [#allocation4], 1
    %s1807 = scalar_lea.sflag [#allocation4], 1
    %1808 = vsyncpa %s1807, 1

</llo_original>
